<compile_context>
chip_gen: v7x
topology: tpu7x:2x2x1
jax: 0.10.0
libtpu: 0.0.40
codegen_flags: <defaults>
</compile_context>

<pallas_src>
import functools
import math

import jax
import jax.numpy as jnp
import numpy as np
from jax.experimental import pallas as pl
from jax.experimental.pallas import tpu as pltpu


# ---------------------------------------------------------------------------
# Fused kernel: batched projections + per-head attention + output projection
# ---------------------------------------------------------------------------
def mhca_fused_kernel(x_ref, y_ref, wkT_ref, wvT_ref, wqT_ref,
                      bk_ref, bv_ref, bq_ref, woT_ref, bo_ref,
                      o_ref,
                      k_scr, v_scr, q_scr, vals_scr, vrs_scr,
                      *, num_heads, head_dim, mxu_dtype, approx_softmax):
    seq_y = y_ref.shape[1]
    inv_sqrt_d = 1.0 / math.sqrt(head_dim)
    f32 = jnp.float32

    x = x_ref[0].astype(mxu_dtype)                      # (Sx, dm)
    y = y_ref[0].astype(mxu_dtype)                      # (Sy, dm)

    # ---- Phase 1: batched projections, N = d_model (full MXU output width). ----
    k_scr[...] = (jnp.dot(x, wkT_ref[...], preferred_element_type=f32)
                  + bk_ref[...]).astype(k_scr.dtype)
    v_scr[...] = (jnp.dot(x, wvT_ref[...], preferred_element_type=f32)
                  + bv_ref[...]).astype(v_scr.dtype)
    # 1/sqrt(hd) folded into the (Sy, dm) Q projection instead of the (Sy, Sx) scores.
    q_scr[...] = ((jnp.dot(y, wqT_ref[...], preferred_element_type=f32)
                   + bq_ref[...]) * inv_sqrt_d).astype(q_scr.dtype)

    # ---- Phase 2: per-head attention.  Static loop; static lane slices; every
    # iteration's result goes straight to scratch (no carried value chain). ----
    for h in range(num_heads):
        c0 = h * head_dim
        qh = q_scr[:, c0:c0 + head_dim]                 # (Sy, hd), already scaled
        kh = k_scr[:, c0:c0 + head_dim]                 # (Sx, hd)
        vh = v_scr[:, c0:c0 + head_dim]                 # (Sx, hd)

        # scores = qh @ kh^T  -> (Sy, Sx), f32 accumulation on the MXU.
        s = jax.lax.dot_general(qh, kh, (((1,), (1,)), ((), ())),
                                preferred_element_type=f32)
        # TODO(synk): additive mask would be added to `s` here (module default: None).
        s = s - jnp.max(s, axis=-1, keepdims=True)
        p = jnp.exp(s)                                  # f32 softmax numerics
        denom = jnp.sum(p, axis=-1, keepdims=True)      # (Sy, 1)

        pv = jnp.dot(p.astype(mxu_dtype), vh, preferred_element_type=f32)   # (Sy, hd)
        # 1/denominator applied to the small (Sy, hd) result, not the (Sy, Sx) probs.
        if approx_softmax:
            pv = pv * pl.reciprocal(denom, approx=True)  # EUP, frees the VALU
        else:
            pv = pv / denom                              # exact path
        r0 = h * seq_y
        vals_scr[r0:r0 + seq_y, :] = pv.astype(vals_scr.dtype)

    # ---- Phase 3: raw reshape + ONE output-projection GEMM. ----
    # torch does values.reshape(B, Sy, H*hd) on the contiguous (B, H, Sy, hd)
    # tensor WITHOUT un-permuting heads; on the flat (H*Sy, hd) scratch the
    # reshaped operand's column block m is exactly rows m, m+H, m+2H, ...
    # Stage that interleave once into a lane-dense (Sy, dm) buffer, then contract
    # the full d_model depth in a single GEMM (no K=hd GEMMs, no unrolled chain).
    for m in range(num_heads):
        vrs_scr[:, m * head_dim:(m + 1) * head_dim] = (
            vals_scr[pl.ds(m, seq_y, stride=num_heads), :])
    out = (jnp.dot(vrs_scr[...], woT_ref[...], preferred_element_type=f32)
           + bo_ref[...])                                # (Sy, dm)
    o_ref[0] = out.astype(o_ref.dtype)                   # single lane-dense store


# ---------------------------------------------------------------------------
# Wrapper
# ---------------------------------------------------------------------------
def multi_head_cross_attention(x, y, params, num_heads, mxu_dtype=jnp.bfloat16):
    B, Sx, dm = x.shape
    _, Sy, _ = y.shape
    hd = dm // num_heads
    f32 = jnp.float32
    wdt = mxu_dtype                               # weight dtype fed to the kernel
    wbytes = jnp.dtype(wdt).itemsize
    sbytes = wbytes

    # ---- parameter plumbing (glue): full-width, head-major weight matrices ----
    # kv output features for head h: [2*h*hd, 2*(h+1)*hd) -> first hd = K, last hd = V.
    WkvT = params["Wkv"].T.reshape(dm, num_heads, 2 * hd)          # (dm, H, 2*hd)
    wkT = WkvT[:, :, :hd].reshape(dm, dm).astype(wdt)              # (dm, dm)
    wvT = WkvT[:, :, hd:].reshape(dm, dm).astype(wdt)              # (dm, dm)
    bkv = params["bkv"].reshape(num_heads, 2 * hd)
    bk = bkv[:, :hd].reshape(1, dm).astype(f32)                    # (1, dm)
    bv = bkv[:, hd:].reshape(1, dm).astype(f32)                    # (1, dm)
    wqT = params["Wq"].T.astype(wdt)                               # (dm, dm)
    bq = params["bq"].reshape(1, dm).astype(f32)                   # (1, dm)
    woT = params["Wo"].T.astype(wdt)                               # (dm, dm)
    bo = params["bo"].reshape(1, dm).astype(f32)                   # (1, dm)

    # ---- VMEM budget derived from the real footprint (review item 8) ----
    weight_vmem = 2 * (4 * dm * dm) * wbytes            # 4 weight mats, double-buffered
    bias_vmem = 2 * (4 * dm) * 4
    act_vmem = 2 * (Sx * dm + 2 * Sy * dm) * 4          # x, y, out blocks (dbl-buffered)
    scratch_vmem = (2 * Sx * dm + 2 * Sy * dm + num_heads * Sy * hd) * sbytes
    temps_vmem = (2 * Sy * Sx + 2 * Sy * dm) * 4        # score/prob + GEMM temporaries
    vmem_limit = int(1.5 * (weight_vmem + bias_vmem + act_vmem + scratch_vmem + temps_vmem))
    vmem_limit = max(vmem_limit, 32 * 1024 * 1024)
    vmem_limit = min(vmem_limit, 100 * 1024 * 1024)     # TODO(synk): cap ~56 MiB on v7x

    cost = pl.CostEstimate(
        flops=int(B * (4 * Sx * dm * dm + 4 * Sy * dm * dm + 4 * Sy * Sx * dm)),
        transcendentals=int(B * num_heads * Sy * Sx),
        bytes_accessed=int(4 * B * (Sx + 2 * Sy) * dm + wbytes * 4 * dm * dm + 16 * dm),
    )

    kernel = functools.partial(
        mhca_fused_kernel,
        num_heads=num_heads, head_dim=hd, mxu_dtype=mxu_dtype,
        approx_softmax=(mxu_dtype != jnp.float32))

    out = pl.pallas_call(
        kernel,
        out_shape=jax.ShapeDtypeStruct((B, Sy, dm), x.dtype),
        grid_spec=pltpu.PrefetchScalarGridSpec(
            num_scalar_prefetch=0,
            grid=(B,),
            in_specs=[
                pl.BlockSpec((1, Sx, dm), lambda b: (b, 0, 0)),    # x
                pl.BlockSpec((1, Sy, dm), lambda b: (b, 0, 0)),    # y
                pl.BlockSpec((dm, dm), lambda b: (0, 0)),          # Wk^T
                pl.BlockSpec((dm, dm), lambda b: (0, 0)),          # Wv^T
                pl.BlockSpec((dm, dm), lambda b: (0, 0)),          # Wq^T
                pl.BlockSpec((1, dm), lambda b: (0, 0)),           # bk
                pl.BlockSpec((1, dm), lambda b: (0, 0)),           # bv
                pl.BlockSpec((1, dm), lambda b: (0, 0)),           # bq
                pl.BlockSpec((dm, dm), lambda b: (0, 0)),          # Wo^T
                pl.BlockSpec((1, dm), lambda b: (0, 0)),           # bo
            ],
            out_specs=pl.BlockSpec((1, Sy, dm), lambda b: (b, 0, 0)),
            scratch_shapes=[
                pltpu.VMEM((Sx, dm), mxu_dtype),                   # K projection
                pltpu.VMEM((Sx, dm), mxu_dtype),                   # V projection
                pltpu.VMEM((Sy, dm), mxu_dtype),                   # Q projection (scaled)
                pltpu.VMEM((num_heads * Sy, hd), mxu_dtype),       # per-head vals (flat)
                pltpu.VMEM((Sy, dm), mxu_dtype),                   # raw-reshape staging
            ],
        ),
        compiler_params=pltpu.CompilerParams(
            dimension_semantics=("parallel",),
            vmem_limit_bytes=vmem_limit),
        cost_estimate=cost,
    )(x, y, wkT, wvT, wqT, bk, bv, bq, woT, bo)
    return out


# ---------------------------------------------------------------------------
# Pure-JAX reference (mirrors the PyTorch forward exactly, f32)
# ---------------------------------------------------------------------------
def reference_forward(x, y, params, num_heads):
    B, Sx, dm = x.shape
    _, Sy, _ = y.shape
    hd = dm // num_heads
    kv = x @ params["Wkv"].T + params["bkv"]            # (B, Sx, 2*dm)
    q = y @ params["Wq"].T + params["bq"]               # (B, Sy, dm)
    kv = kv.reshape(B, Sx, num_heads, 2 * hd).transpose(0, 2, 1, 3)
    q = q.reshape(B, Sy, num_heads, hd).transpose(0, 2, 1, 3)
    k, v = kv[..., :hd], kv[..., hd:]
    scaled = jnp.einsum("bhqd,bhkd->bhqk", q, k) / math.sqrt(hd)
    attn = jax.nn.softmax(scaled, axis=-1)
    values = jnp.einsum("bhqk,bhkd->bhqd", attn, v)      # (B, H, Sy, hd)
    values = values.reshape(B, Sy, num_heads * hd)       # torch-style raw reshape
    return values @ params["Wo"].T + params["bo"]


def init_params(key, d_model):
    """Deterministic init matching nn.Linear shapes (uniform +-1/sqrt(fan_in))."""
    ks = jax.random.split(key, 6)
    lim = 1.0 / math.sqrt(d_model)
    u = lambda k, shape: jax.random.uniform(k, shape, jnp.float32, -lim, lim)
    return {
        "Wkv": u(ks[0], (2 * d_model, d_model)),
        "bkv": u(ks[1], (2 * d_model,)),
        "Wq": u(ks[2], (d_model, d_model)),
        "bq": u(ks[3], (d_model,)),
        "Wo": u(ks[4], (d_model, d_model)),
        "bo": u(ks[5], (d_model,)),
    }


if __name__ == "__main__":
    B, Sx, Sy = 2, 16, 8
    d_model, num_heads = 32, 4

    key = jax.random.PRNGKey(0)
    kx, ky, kp = jax.random.split(key, 3)
    x = jax.random.normal(kx, (B, Sx, d_model), jnp.float32)
    y = jax.random.normal(ky, (B, Sy, d_model), jnp.float32)
    params = init_params(kp, d_model)

    ref = reference_forward(x, y, params, num_heads)

    fwd = jax.jit(multi_head_cross_attention,
                  static_argnames=("num_heads", "mxu_dtype"))

    # Exact-semantics path: f32 operands end-to-end, exact softmax normalization.
    out_f32 = jax.block_until_ready(
        fwd(x, y, params, num_heads=num_heads, mxu_dtype=jnp.float32))
    np.testing.assert_allclose(np.asarray(out_f32), np.asarray(ref),
                               rtol=1e-4, atol=1e-4)

    # Fast path: bf16 weights/operands (f32 accumulation + f32 softmax, EUP reciprocal).
    out_bf16 = jax.block_until_ready(
        fwd(x, y, params, num_heads=num_heads, mxu_dtype=jnp.bfloat16))
    np.testing.assert_allclose(np.asarray(out_bf16), np.asarray(ref),
                               rtol=5e-2, atol=5e-2)

    print("KERNEL_OK")
</pallas_src>

<mosaic_0001>
module attributes {stable_mosaic.version = 11 : i64} {
  func.func @mhca_fused_kernel(%arg0: i32, %arg1: memref<1x16x32xf32, #tpu.memory_space<vmem>>, %arg2: memref<1x8x32xf32, #tpu.memory_space<vmem>>, %arg3: memref<32x32xf32, #tpu.memory_space<vmem>>, %arg4: memref<32x32xf32, #tpu.memory_space<vmem>>, %arg5: memref<32x32xf32, #tpu.memory_space<vmem>>, %arg6: memref<1x32xf32, #tpu.memory_space<vmem>>, %arg7: memref<1x32xf32, #tpu.memory_space<vmem>>, %arg8: memref<1x32xf32, #tpu.memory_space<vmem>>, %arg9: memref<32x32xf32, #tpu.memory_space<vmem>>, %arg10: memref<1x32xf32, #tpu.memory_space<vmem>>, %arg11: memref<1x8x32xf32, #tpu.memory_space<vmem>>, %arg12: memref<16x32xf32, #tpu.memory_space<vmem>>, %arg13: memref<16x32xf32, #tpu.memory_space<vmem>>, %arg14: memref<8x32xf32, #tpu.memory_space<vmem>>, %arg15: memref<32x8xf32, #tpu.memory_space<vmem>>, %arg16: memref<8x32xf32, #tpu.memory_space<vmem>>) attributes {dimension_semantics = [#tpu.dimension_semantics<parallel>], iteration_bounds = array<i64: 2>, scalar_prefetch = 0 : i64, scratch_operands = 5 : i64, tpu.core_type = #tpu.core_type<tc>, window_params = [{transform_indices = @transform_0, window_bounds = array<i64: 1, 16, 32>}, {transform_indices = @transform_1, window_bounds = array<i64: 1, 8, 32>}, {pipeline_mode = #tpu.pipeline_mode<synchronous>, transform_indices = @transform_2, window_bounds = array<i64: 32, 32>}, {pipeline_mode = #tpu.pipeline_mode<synchronous>, transform_indices = @transform_3, window_bounds = array<i64: 32, 32>}, {pipeline_mode = #tpu.pipeline_mode<synchronous>, transform_indices = @transform_4, window_bounds = array<i64: 32, 32>}, {pipeline_mode = #tpu.pipeline_mode<synchronous>, transform_indices = @transform_5, window_bounds = array<i64: 1, 32>}, {pipeline_mode = #tpu.pipeline_mode<synchronous>, transform_indices = @transform_6, window_bounds = array<i64: 1, 32>}, {pipeline_mode = #tpu.pipeline_mode<synchronous>, transform_indices = @transform_7, window_bounds = array<i64: 1, 32>}, {pipeline_mode = #tpu.pipeline_mode<synchronous>, transform_indices = @transform_8, window_bounds = array<i64: 32, 32>}, {pipeline_mode = #tpu.pipeline_mode<synchronous>, transform_indices = @transform_9, window_bounds = array<i64: 1, 32>}, {transform_indices = @transform_10, window_bounds = array<i64: 1, 8, 32>}]} {
    %c0 = arith.constant 0 : index
    %c0_0 = arith.constant 0 : index
    %c0_1 = arith.constant 0 : index
    %0 = vector.load %arg1[%c0, %c0_0, %c0_1] : memref<1x16x32xf32, #tpu.memory_space<vmem>>, vector<1x16x32xf32>
    %1 = vector.shape_cast %0 : vector<1x16x32xf32> to vector<16x32xf32>
    %c0_2 = arith.constant 0 : index
    %c0_3 = arith.constant 0 : index
    %c0_4 = arith.constant 0 : index
    %2 = vector.load %arg2[%c0_2, %c0_3, %c0_4] : memref<1x8x32xf32, #tpu.memory_space<vmem>>, vector<1x8x32xf32>
    %3 = vector.shape_cast %2 : vector<1x8x32xf32> to vector<8x32xf32>
    %c0_5 = arith.constant 0 : index
    %c0_6 = arith.constant 0 : index
    %4 = vector.load %arg3[%c0_5, %c0_6] : memref<32x32xf32, #tpu.memory_space<vmem>>, vector<32x32xf32>
    %cst = arith.constant dense<0.000000e+00> : vector<16x32xf32>
    %5 = tpu.matmul %1, %4, %cst {dimension_numbers = #tpu.dot_dimension_numbers<[1], [0], [0], [1], [0, 0, 1, 1], [], []>} : vector<16x32xf32>, vector<32x32xf32>, vector<16x32xf32> -> vector<16x32xf32>
    %c0_7 = arith.constant 0 : index
    %c0_8 = arith.constant 0 : index
    %6 = vector.load %arg6[%c0_7, %c0_8] : memref<1x32xf32, #tpu.memory_space<vmem>>, vector<1x32xf32>
    %7 = vector.broadcast %6 : vector<1x32xf32> to vector<16x32xf32>
    %8 = arith.addf %5, %7 : vector<16x32xf32>
    %c0_9 = arith.constant 0 : index
    %c0_10 = arith.constant 0 : index
    %9 = vector.load %arg12[%c0_9, %c0_10] : memref<16x32xf32, #tpu.memory_space<vmem>>, vector<16x32xf32>
    tpu.vector_store %arg12[%c0_9, %c0_10], %8 {strides = array<i32>} : memref<16x32xf32, #tpu.memory_space<vmem>>, vector<16x32xf32>,
    %c0_11 = arith.constant 0 : index
    %c0_12 = arith.constant 0 : index
    %10 = vector.load %arg4[%c0_11, %c0_12] : memref<32x32xf32, #tpu.memory_space<vmem>>, vector<32x32xf32>
    %cst_13 = arith.constant dense<0.000000e+00> : vector<16x32xf32>
    %11 = tpu.matmul %1, %10, %cst_13 {dimension_numbers = #tpu.dot_dimension_numbers<[1], [0], [0], [1], [0, 0, 1, 1], [], []>} : vector<16x32xf32>, vector<32x32xf32>, vector<16x32xf32> -> vector<16x32xf32>
    %c0_14 = arith.constant 0 : index
    %c0_15 = arith.constant 0 : index
    %12 = vector.load %arg7[%c0_14, %c0_15] : memref<1x32xf32, #tpu.memory_space<vmem>>, vector<1x32xf32>
    %13 = vector.broadcast %12 : vector<1x32xf32> to vector<16x32xf32>
    %14 = arith.addf %11, %13 : vector<16x32xf32>
    %c0_16 = arith.constant 0 : index
    %c0_17 = arith.constant 0 : index
    %15 = vector.load %arg13[%c0_16, %c0_17] : memref<16x32xf32, #tpu.memory_space<vmem>>, vector<16x32xf32>
    tpu.vector_store %arg13[%c0_16, %c0_17], %14 {strides = array<i32>} : memref<16x32xf32, #tpu.memory_space<vmem>>, vector<16x32xf32>,
    %c0_18 = arith.constant 0 : index
    %c0_19 = arith.constant 0 : index
    %16 = vector.load %arg5[%c0_18, %c0_19] : memref<32x32xf32, #tpu.memory_space<vmem>>, vector<32x32xf32>
    %cst_20 = arith.constant dense<0.000000e+00> : vector<8x32xf32>
    %17 = tpu.matmul %3, %16, %cst_20 {dimension_numbers = #tpu.dot_dimension_numbers<[1], [0], [0], [1], [0, 0, 1, 1], [], []>} : vector<8x32xf32>, vector<32x32xf32>, vector<8x32xf32> -> vector<8x32xf32>
    %c0_21 = arith.constant 0 : index
    %c0_22 = arith.constant 0 : index
    %18 = vector.load %arg8[%c0_21, %c0_22] : memref<1x32xf32, #tpu.memory_space<vmem>>, vector<1x32xf32>
    %19 = vector.broadcast %18 : vector<1x32xf32> to vector<8x32xf32>
    %20 = arith.addf %17, %19 : vector<8x32xf32>
    %cst_23 = arith.constant 0.353553385 : f32
    %21 = vector.broadcast %cst_23 : f32 to vector<8x32xf32>
    %22 = arith.mulf %20, %21 : vector<8x32xf32>
    %c0_24 = arith.constant 0 : index
    %c0_25 = arith.constant 0 : index
    %23 = vector.load %arg14[%c0_24, %c0_25] : memref<8x32xf32, #tpu.memory_space<vmem>>, vector<8x32xf32>
    tpu.vector_store %arg14[%c0_24, %c0_25], %22 {strides = array<i32>} : memref<8x32xf32, #tpu.memory_space<vmem>>, vector<8x32xf32>,
    %c0_26 = arith.constant 0 : index
    %c0_27 = arith.constant 0 : index
    %24 = vector.load %arg14[%c0_26, %c0_27] : memref<8x32xf32, #tpu.memory_space<vmem>>, vector<8x8xf32>
    %c0_28 = arith.constant 0 : index
    %c0_29 = arith.constant 0 : index
    %25 = vector.load %arg12[%c0_28, %c0_29] : memref<16x32xf32, #tpu.memory_space<vmem>>, vector<16x8xf32>
    %c0_30 = arith.constant 0 : index
    %c0_31 = arith.constant 0 : index
    %26 = vector.load %arg13[%c0_30, %c0_31] : memref<16x32xf32, #tpu.memory_space<vmem>>, vector<16x8xf32>
    %cst_32 = arith.constant dense<0.000000e+00> : vector<8x16xf32>
    %27 = tpu.matmul %24, %25, %cst_32 {dimension_numbers = #tpu.dot_dimension_numbers<[1], [1], [0], [0], [0, 0, 1, 0], [], []>} : vector<8x8xf32>, vector<16x8xf32>, vector<8x16xf32> -> vector<8x16xf32>
    %cst_33 = arith.constant dense<0xFF800000> : vector<8xf32>
    %28 = vector.multi_reduction <maximumf>, %27, %cst_33 [1] : vector<8x16xf32> to vector<8xf32>
    %29 = vector.shape_cast %28 : vector<8xf32> to vector<8x1xf32>
    %30 = vector.broadcast %29 : vector<8x1xf32> to vector<8x16xf32>
    %31 = arith.subf %27, %30 : vector<8x16xf32>
    %32 = math.exp %31 : vector<8x16xf32>
    %cst_34 = arith.constant dense<0.000000e+00> : vector<8xf32>
    %33 = vector.multi_reduction <add>, %32, %cst_34 [1] : vector<8x16xf32> to vector<8xf32>
    %34 = vector.shape_cast %33 : vector<8xf32> to vector<8x1xf32>
    %cst_35 = arith.constant dense<0.000000e+00> : vector<8x8xf32>
    %35 = tpu.matmul %32, %26, %cst_35 {dimension_numbers = #tpu.dot_dimension_numbers<[1], [0], [0], [1], [0, 0, 1, 1], [], []>} : vector<8x16xf32>, vector<16x8xf32>, vector<8x8xf32> -> vector<8x8xf32>
    %36 = vector.broadcast %34 : vector<8x1xf32> to vector<8x8xf32>
    %37 = arith.divf %35, %36 : vector<8x8xf32>
    %c0_36 = arith.constant 0 : index
    %c0_37 = arith.constant 0 : index
    %38 = vector.load %arg15[%c0_36, %c0_37] : memref<32x8xf32, #tpu.memory_space<vmem>>, vector<8x8xf32>
    tpu.vector_store %arg15[%c0_36, %c0_37], %37 {strides = array<i32>} : memref<32x8xf32, #tpu.memory_space<vmem>>, vector<8x8xf32>,
    %c0_38 = arith.constant 0 : index
    %c8 = arith.constant 8 : index
    %39 = vector.load %arg14[%c0_38, %c8] : memref<8x32xf32, #tpu.memory_space<vmem>>, vector<8x8xf32>
    %c0_39 = arith.constant 0 : index
    %c8_40 = arith.constant 8 : index
    %40 = vector.load %arg12[%c0_39, %c8_40] : memref<16x32xf32, #tpu.memory_space<vmem>>, vector<16x8xf32>
    %c0_41 = arith.constant 0 : index
    %c8_42 = arith.constant 8 : index
    %41 = vector.load %arg13[%c0_41, %c8_42] : memref<16x32xf32, #tpu.memory_space<vmem>>, vector<16x8xf32>
    %cst_43 = arith.constant dense<0.000000e+00> : vector<8x16xf32>
    %42 = tpu.matmul %39, %40, %cst_43 {dimension_numbers = #tpu.dot_dimension_numbers<[1], [1], [0], [0], [0, 0, 1, 0], [], []>} : vector<8x8xf32>, vector<16x8xf32>, vector<8x16xf32> -> vector<8x16xf32>
    %cst_44 = arith.constant dense<0xFF800000> : vector<8xf32>
    %43 = vector.multi_reduction <maximumf>, %42, %cst_44 [1] : vector<8x16xf32> to vector<8xf32>
    %44 = vector.shape_cast %43 : vector<8xf32> to vector<8x1xf32>
    %45 = vector.broadcast %44 : vector<8x1xf32> to vector<8x16xf32>
    %46 = arith.subf %42, %45 : vector<8x16xf32>
    %47 = math.exp %46 : vector<8x16xf32>
    %cst_45 = arith.constant dense<0.000000e+00> : vector<8xf32>
    %48 = vector.multi_reduction <add>, %47, %cst_45 [1] : vector<8x16xf32> to vector<8xf32>
    %49 = vector.shape_cast %48 : vector<8xf32> to vector<8x1xf32>
    %cst_46 = arith.constant dense<0.000000e+00> : vector<8x8xf32>
    %50 = tpu.matmul %47, %41, %cst_46 {dimension_numbers = #tpu.dot_dimension_numbers<[1], [0], [0], [1], [0, 0, 1, 1], [], []>} : vector<8x16xf32>, vector<16x8xf32>, vector<8x8xf32> -> vector<8x8xf32>
    %51 = vector.broadcast %49 : vector<8x1xf32> to vector<8x8xf32>
    %52 = arith.divf %50, %51 : vector<8x8xf32>
    %c8_47 = arith.constant 8 : index
    %c0_48 = arith.constant 0 : index
    %53 = vector.load %arg15[%c8_47, %c0_48] : memref<32x8xf32, #tpu.memory_space<vmem>>, vector<8x8xf32>
    tpu.vector_store %arg15[%c8_47, %c0_48], %52 {strides = array<i32>} : memref<32x8xf32, #tpu.memory_space<vmem>>, vector<8x8xf32>,
    %c0_49 = arith.constant 0 : index
    %c16 = arith.constant 16 : index
    %54 = vector.load %arg14[%c0_49, %c16] : memref<8x32xf32, #tpu.memory_space<vmem>>, vector<8x8xf32>
    %c0_50 = arith.constant 0 : index
    %c16_51 = arith.constant 16 : index
    %55 = vector.load %arg12[%c0_50, %c16_51] : memref<16x32xf32, #tpu.memory_space<vmem>>, vector<16x8xf32>
    %c0_52 = arith.constant 0 : index
    %c16_53 = arith.constant 16 : index
    %56 = vector.load %arg13[%c0_52, %c16_53] : memref<16x32xf32, #tpu.memory_space<vmem>>, vector<16x8xf32>
    %cst_54 = arith.constant dense<0.000000e+00> : vector<8x16xf32>
    %57 = tpu.matmul %54, %55, %cst_54 {dimension_numbers = #tpu.dot_dimension_numbers<[1], [1], [0], [0], [0, 0, 1, 0], [], []>} : vector<8x8xf32>, vector<16x8xf32>, vector<8x16xf32> -> vector<8x16xf32>
    %cst_55 = arith.constant dense<0xFF800000> : vector<8xf32>
    %58 = vector.multi_reduction <maximumf>, %57, %cst_55 [1] : vector<8x16xf32> to vector<8xf32>
    %59 = vector.shape_cast %58 : vector<8xf32> to vector<8x1xf32>
    %60 = vector.broadcast %59 : vector<8x1xf32> to vector<8x16xf32>
    %61 = arith.subf %57, %60 : vector<8x16xf32>
    %62 = math.exp %61 : vector<8x16xf32>
    %cst_56 = arith.constant dense<0.000000e+00> : vector<8xf32>
    %63 = vector.multi_reduction <add>, %62, %cst_56 [1] : vector<8x16xf32> to vector<8xf32>
    %64 = vector.shape_cast %63 : vector<8xf32> to vector<8x1xf32>
    %cst_57 = arith.constant dense<0.000000e+00> : vector<8x8xf32>
    %65 = tpu.matmul %62, %56, %cst_57 {dimension_numbers = #tpu.dot_dimension_numbers<[1], [0], [0], [1], [0, 0, 1, 1], [], []>} : vector<8x16xf32>, vector<16x8xf32>, vector<8x8xf32> -> vector<8x8xf32>
    %66 = vector.broadcast %64 : vector<8x1xf32> to vector<8x8xf32>
    %67 = arith.divf %65, %66 : vector<8x8xf32>
    %c16_58 = arith.constant 16 : index
    %c0_59 = arith.constant 0 : index
    %68 = vector.load %arg15[%c16_58, %c0_59] : memref<32x8xf32, #tpu.memory_space<vmem>>, vector<8x8xf32>
    tpu.vector_store %arg15[%c16_58, %c0_59], %67 {strides = array<i32>} : memref<32x8xf32, #tpu.memory_space<vmem>>, vector<8x8xf32>,
    %c0_60 = arith.constant 0 : index
    %c24 = arith.constant 24 : index
    %69 = vector.load %arg14[%c0_60, %c24] : memref<8x32xf32, #tpu.memory_space<vmem>>, vector<8x8xf32>
    %c0_61 = arith.constant 0 : index
    %c24_62 = arith.constant 24 : index
    %70 = vector.load %arg12[%c0_61, %c24_62] : memref<16x32xf32, #tpu.memory_space<vmem>>, vector<16x8xf32>
    %c0_63 = arith.constant 0 : index
    %c24_64 = arith.constant 24 : index
    %71 = vector.load %arg13[%c0_63, %c24_64] : memref<16x32xf32, #tpu.memory_space<vmem>>, vector<16x8xf32>
    %cst_65 = arith.constant dense<0.000000e+00> : vector<8x16xf32>
    %72 = tpu.matmul %69, %70, %cst_65 {dimension_numbers = #tpu.dot_dimension_numbers<[1], [1], [0], [0], [0, 0, 1, 0], [], []>} : vector<8x8xf32>, vector<16x8xf32>, vector<8x16xf32> -> vector<8x16xf32>
    %cst_66 = arith.constant dense<0xFF800000> : vector<8xf32>
    %73 = vector.multi_reduction <maximumf>, %72, %cst_66 [1] : vector<8x16xf32> to vector<8xf32>
    %74 = vector.shape_cast %73 : vector<8xf32> to vector<8x1xf32>
    %75 = vector.broadcast %74 : vector<8x1xf32> to vector<8x16xf32>
    %76 = arith.subf %72, %75 : vector<8x16xf32>
    %77 = math.exp %76 : vector<8x16xf32>
    %cst_67 = arith.constant dense<0.000000e+00> : vector<8xf32>
    %78 = vector.multi_reduction <add>, %77, %cst_67 [1] : vector<8x16xf32> to vector<8xf32>
    %79 = vector.shape_cast %78 : vector<8xf32> to vector<8x1xf32>
    %cst_68 = arith.constant dense<0.000000e+00> : vector<8x8xf32>
    %80 = tpu.matmul %77, %71, %cst_68 {dimension_numbers = #tpu.dot_dimension_numbers<[1], [0], [0], [1], [0, 0, 1, 1], [], []>} : vector<8x16xf32>, vector<16x8xf32>, vector<8x8xf32> -> vector<8x8xf32>
    %81 = vector.broadcast %79 : vector<8x1xf32> to vector<8x8xf32>
    %82 = arith.divf %80, %81 : vector<8x8xf32>
    %c24_69 = arith.constant 24 : index
    %c0_70 = arith.constant 0 : index
    %83 = vector.load %arg15[%c24_69, %c0_70] : memref<32x8xf32, #tpu.memory_space<vmem>>, vector<8x8xf32>
    tpu.vector_store %arg15[%c24_69, %c0_70], %82 {strides = array<i32>} : memref<32x8xf32, #tpu.memory_space<vmem>>, vector<8x8xf32>,
    %c0_71 = arith.constant 0 : index
    %c0_72 = arith.constant 0 : index
    %84 = tpu.strided_load %arg15[%c0_71, %c0_72] {strides = array<i32: 4, 1>} : memref<32x8xf32, #tpu.memory_space<vmem>>, vector<8x8xf32>
    %c0_73 = arith.constant 0 : index
    %c0_74 = arith.constant 0 : index
    %85 = vector.load %arg16[%c0_73, %c0_74] : memref<8x32xf32, #tpu.memory_space<vmem>>, vector<8x8xf32>
    tpu.vector_store %arg16[%c0_73, %c0_74], %84 {strides = array<i32>} : memref<8x32xf32, #tpu.memory_space<vmem>>, vector<8x8xf32>,
    %c1 = arith.constant 1 : index
    %c0_75 = arith.constant 0 : index
    %86 = tpu.strided_load %arg15[%c1, %c0_75] {strides = array<i32: 4, 1>} : memref<32x8xf32, #tpu.memory_space<vmem>>, vector<8x8xf32>
    %c0_76 = arith.constant 0 : index
    %c8_77 = arith.constant 8 : index
    %87 = vector.load %arg16[%c0_76, %c8_77] : memref<8x32xf32, #tpu.memory_space<vmem>>, vector<8x8xf32>
    tpu.vector_store %arg16[%c0_76, %c8_77], %86 {strides = array<i32>} : memref<8x32xf32, #tpu.memory_space<vmem>>, vector<8x8xf32>,
    %c2 = arith.constant 2 : index
    %c0_78 = arith.constant 0 : index
    %88 = tpu.strided_load %arg15[%c2, %c0_78] {strides = array<i32: 4, 1>} : memref<32x8xf32, #tpu.memory_space<vmem>>, vector<8x8xf32>
    %c0_79 = arith.constant 0 : index
    %c16_80 = arith.constant 16 : index
    %89 = vector.load %arg16[%c0_79, %c16_80] : memref<8x32xf32, #tpu.memory_space<vmem>>, vector<8x8xf32>
    tpu.vector_store %arg16[%c0_79, %c16_80], %88 {strides = array<i32>} : memref<8x32xf32, #tpu.memory_space<vmem>>, vector<8x8xf32>,
    %c3 = arith.constant 3 : index
    %c0_81 = arith.constant 0 : index
    %90 = tpu.strided_load %arg15[%c3, %c0_81] {strides = array<i32: 4, 1>} : memref<32x8xf32, #tpu.memory_space<vmem>>, vector<8x8xf32>
    %c0_82 = arith.constant 0 : index
    %c24_83 = arith.constant 24 : index
    %91 = vector.load %arg16[%c0_82, %c24_83] : memref<8x32xf32, #tpu.memory_space<vmem>>, vector<8x8xf32>
    tpu.vector_store %arg16[%c0_82, %c24_83], %90 {strides = array<i32>} : memref<8x32xf32, #tpu.memory_space<vmem>>, vector<8x8xf32>,
    %c0_84 = arith.constant 0 : index
    %c0_85 = arith.constant 0 : index
    %92 = vector.load %arg16[%c0_84, %c0_85] : memref<8x32xf32, #tpu.memory_space<vmem>>, vector<8x32xf32>
    %c0_86 = arith.constant 0 : index
    %c0_87 = arith.constant 0 : index
    %93 = vector.load %arg9[%c0_86, %c0_87] : memref<32x32xf32, #tpu.memory_space<vmem>>, vector<32x32xf32>
    %cst_88 = arith.constant dense<0.000000e+00> : vector<8x32xf32>
    %94 = tpu.matmul %92, %93, %cst_88 {dimension_numbers = #tpu.dot_dimension_numbers<[1], [0], [0], [1], [0, 0, 1, 1], [], []>} : vector<8x32xf32>, vector<32x32xf32>, vector<8x32xf32> -> vector<8x32xf32>
    %c0_89 = arith.constant 0 : index
    %c0_90 = arith.constant 0 : index
    %95 = vector.load %arg10[%c0_89, %c0_90] : memref<1x32xf32, #tpu.memory_space<vmem>>, vector<1x32xf32>
    %96 = vector.broadcast %95 : vector<1x32xf32> to vector<8x32xf32>
    %97 = arith.addf %94, %96 : vector<8x32xf32>
    %c0_91 = arith.constant 0 : index
    %c0_92 = arith.constant 0 : index
    %c0_93 = arith.constant 0 : index
    %98 = vector.load %arg11[%c0_91, %c0_92, %c0_93] : memref<1x8x32xf32, #tpu.memory_space<vmem>>, vector<1x8x32xf32>
    %99 = vector.shape_cast %98 : vector<1x8x32xf32> to vector<8x32xf32>
    %100 = vector.shape_cast %97 : vector<8x32xf32> to vector<1x8x32xf32>
    tpu.vector_store %arg11[%c0_91, %c0_92, %c0_93], %100 {strides = array<i32>} : memref<1x8x32xf32, #tpu.memory_space<vmem>>, vector<1x8x32xf32>,
    return
  }
  func.func @transform_0(%arg0: i32) -> (i32, i32, i32) {
    %c0_i32 = arith.constant 0 : i32
    %c0_i32_0 = arith.constant 0 : i32
    %c0_i32_1 = arith.constant 0 : i32
    return %arg0, %c0_i32, %c0_i32_0 : i32, i32, i32
  }
  func.func @transform_1(%arg0: i32) -> (i32, i32, i32) {
    %c0_i32 = arith.constant 0 : i32
    %c0_i32_0 = arith.constant 0 : i32
    %c0_i32_1 = arith.constant 0 : i32
    return %arg0, %c0_i32, %c0_i32_0 : i32, i32, i32
  }
  func.func @transform_2(%arg0: i32) -> (i32, i32) {
    %c0_i32 = arith.constant 0 : i32
    %c0_i32_0 = arith.constant 0 : i32
    %c0_i32_1 = arith.constant 0 : i32
    return %c0_i32, %c0_i32_0 : i32, i32
  }
  func.func @transform_3(%arg0: i32) -> (i32, i32) {
    %c0_i32 = arith.constant 0 : i32
    %c0_i32_0 = arith.constant 0 : i32
    %c0_i32_1 = arith.constant 0 : i32
    return %c0_i32, %c0_i32_0 : i32, i32
  }
  func.func @transform_4(%arg0: i32) -> (i32, i32) {
    %c0_i32 = arith.constant 0 : i32
    %c0_i32_0 = arith.constant 0 : i32
    %c0_i32_1 = arith.constant 0 : i32
    return %c0_i32, %c0_i32_0 : i32, i32
  }
  func.func @transform_5(%arg0: i32) -> (i32, i32) {
    %c0_i32 = arith.constant 0 : i32
    %c0_i32_0 = arith.constant 0 : i32
    %c0_i32_1 = arith.constant 0 : i32
    return %c0_i32, %c0_i32_0 : i32, i32
  }
  func.func @transform_6(%arg0: i32) -> (i32, i32) {
    %c0_i32 = arith.constant 0 : i32
    %c0_i32_0 = arith.constant 0 : i32
    %c0_i32_1 = arith.constant 0 : i32
    return %c0_i32, %c0_i32_0 : i32, i32
  }
  func.func @transform_7(%arg0: i32) -> (i32, i32) {
    %c0_i32 = arith.constant 0 : i32
    %c0_i32_0 = arith.constant 0 : i32
    %c0_i32_1 = arith.constant 0 : i32
    return %c0_i32, %c0_i32_0 : i32, i32
  }
  func.func @transform_8(%arg0: i32) -> (i32, i32) {
    %c0_i32 = arith.constant 0 : i32
    %c0_i32_0 = arith.constant 0 : i32
    %c0_i32_1 = arith.constant 0 : i32
    return %c0_i32, %c0_i32_0 : i32, i32
  }
  func.func @transform_9(%arg0: i32) -> (i32, i32) {
    %c0_i32 = arith.constant 0 : i32
    %c0_i32_0 = arith.constant 0 : i32
    %c0_i32_1 = arith.constant 0 : i32
    return %c0_i32, %c0_i32_0 : i32, i32
  }
  func.func @transform_10(%arg0: i32) -> (i32, i32, i32) {
    %c0_i32 = arith.constant 0 : i32
    %c0_i32_0 = arith.constant 0 : i32
    %c0_i32_1 = arith.constant 0 : i32
    return %arg0, %c0_i32, %c0_i32_0 : i32, i32, i32
  }
}

</mosaic_0001>

<llo_original>
// kernel: multi_head_cross_attention.1
$region0: #{multi_head_cross_attention.1}
  #allocation0 [shape = 'u32[]', space=smem, size = 0x4, offset = 0x4, fixed_abs, tag = 'smem constant byte address 0x4 - core index']
  #allocation1 [shape = 'u32[144,128]{1,0:T(1,128)}', space=vmem, size = 0x12000, scoped, tag = 'internal scratch']
  #allocation2 [shape = 'f32[16,32]{1,0:T(8,128)}', space=vmem, size = 0x2000, scoped, tag = 'scratch operand']
  #allocation3 [shape = 'f32[16,32]{1,0:T(8,128)}', space=vmem, size = 0x2000, scoped, tag = 'scratch operand']
  #allocation4 [shape = 'f32[8,32]{1,0:T(8,128)}', space=vmem, size = 0x1000, scoped, tag = 'scratch operand']
  #allocation5 [shape = 'f32[32,8]{1,0:T(8,128)}', space=vmem, size = 0x4000, scoped, tag = 'scratch operand']
  #allocation6 [shape = 'f32[8,32]{1,0:T(8,128)}', space=vmem, size = 0x1000, scoped, tag = 'scratch operand']
  %s0 = inlined_call_operand.vmem [shape: f32[2,16,32], index: 0, kind: input, shape index: {}]
  %s1 = inlined_call_operand.vmem [shape: f32[2,8,32], index: 1, kind: input, shape index: {}]
  %s2 = inlined_call_operand.vmem [shape: f32[32,32], index: 2, kind: input, shape index: {}]
  %s3 = inlined_call_operand.vmem [shape: f32[32,32], index: 3, kind: input, shape index: {}]
  %s4 = inlined_call_operand.vmem [shape: f32[32,32], index: 4, kind: input, shape index: {}]
  %s5 = inlined_call_operand.vmem [shape: f32[1,32], index: 5, kind: input, shape index: {}]
  %s6 = inlined_call_operand.vmem [shape: f32[1,32], index: 6, kind: input, shape index: {}]
  %s7 = inlined_call_operand.vmem [shape: f32[1,32], index: 7, kind: input, shape index: {}]
  %s8 = inlined_call_operand.vmem [shape: f32[32,32], index: 8, kind: input, shape index: {}]
  %s9 = inlined_call_operand.vmem [shape: f32[1,32], index: 9, kind: input, shape index: {}]
  %s10 = inlined_call_operand.hbm [shape: f32[2,8,32], index: 10, kind: output, shape index: {}]
  %s11 = sld [smem:[#allocation0]]
  $region73: #{multi_head_cross_attention.1} parent=0
    _
  %s13 = ssub.s32 1, %s11
  %s14 = scalar_select 0, %s13, %s11
  $region1: #{multi_head_cross_attention.1} parent=0
    #allocation7 [shape = 'u8[8192]{0}', space=vmem, size = 0x2000, scoped, tag = 'output window, operand 0']
    #allocation8 [shape = 's32[2]{0}', space=sflag, size = 0x8, scoped, tag = 'scoped memory for multi_head_cross_attention.1']
    %15 = vsyncpa [#allocation8], 0
    %s16 = scalar_lea.sflag [#allocation8], 1
    %17 = vsyncpa %s16, 0
    loop: start=0, step=1, limit=4
    $region2: #{multi_head_cross_attention.1} parent=1 // loop_pre_header
      _
    $region3: #{multi_head_cross_attention.1} parent=1 // loop_header
      %s19 = sphi 0, %s23
      %p20 = scmp.ge.s32.totalorder %s19, 4
      %s29 = sphi 0, %s31
      %s32 = sphi 0, %s29
      %s33 = sphi 0, %s32
      %s49 = sphi 0, %s33
      %s55 = sphi 0, %s57
      %s58 = sphi 0, %s55
      %s59 = sphi 0, %s58
      %s75 = sphi 0, %s59
      %s79 = sphi 0, %s79
      %s81 = sphi 0, %s79
      %s82 = sphi 0, %s81
      %s96 = sphi 0, %s82
      %s100 = sphi 0, %s100
      %s102 = sphi 0, %s100
      %s103 = sphi 0, %s102
      %s117 = sphi 0, %s103
      %s121 = sphi 0, %s121
      %s123 = sphi 0, %s121
      %s124 = sphi 0, %s123
      %s138 = sphi 0, %s124
      %s142 = sphi 0, %s142
      %s144 = sphi 0, %s142
      %s145 = sphi 0, %s144
      %s159 = sphi 0, %s145
      %s163 = sphi 0, %s163
      %s165 = sphi 0, %s163
      %s166 = sphi 0, %s165
      %s180 = sphi 0, %s166
      %s184 = sphi 0, %s184
      %s186 = sphi 0, %s184
      %s187 = sphi 0, %s186
      %s201 = sphi 0, %s187
      %s205 = sphi 0, %s205
      %s207 = sphi 0, %s205
      %s208 = sphi 0, %s207
      %s222 = sphi 0, %s208
      %s226 = sphi 0, %s226
      %s228 = sphi 0, %s226
      %s229 = sphi 0, %s228
      %s243 = sphi 0, %s229
      %s249 = sphi 0, %s251
      %s252 = sphi 0, %s249
      %s253 = sphi 0, %s252
      %s269 = sphi 0, %s253
    $region4: #{multi_head_cross_attention.1} parent=1 // loop_header_branch
      %22 = sbr.rel (%p20) target = $region8
    $region5: #{multi_head_cross_attention.1} parent=1 // loop_body
      %s24 = ssub.s32 %s19, 1
      %s25 = ssub.s32 %s19, 2
      %s26 = sadd.s32 %s19, 1
      %s27 = ssub.s32 %s19, %s26
      %p28 = scmp.eq.s32.totalorder %s27, 0
      %s30 = sadd.s32 %s29, 1
      %s31 = scalar_select %p28, %s29, %s30
      %p34 = pneg %p28
      %p35 = scmp.eq.s32.totalorder %s19, 1
      %p36 = por %p34, %p35
      %p37 = scmp.ne.s32.totalorder %s29, %s32
      %p38 = scmp.eq.s32.totalorder %s19, 0
      %p39 = por %p37, %p38
      %p40 = scmp.ne.s32.totalorder %s29, %s32
      %p41 = scmp.eq.s32.totalorder %s24, 1
      %p42 = por %p40, %p41
      %p43 = scmp.ne.s32.totalorder %s32, %s33
      %p44 = scmp.eq.s32.totalorder %s24, 0
      %p45 = por %p43, %p44
      %p46 = scmp.ne.s32.totalorder %s32, %s33
      %p47 = scmp.eq.s32.totalorder %s25, 1
      %p48 = por %p46, %p47
      %p50 = scmp.ne.s32.totalorder %s33, %s49
      %p51 = scmp.eq.s32.totalorder %s25, 0
      %p52 = por %p50, %p51
      %s53 = ssub.s32 %s19, %s26
      %p54 = scmp.eq.s32.totalorder %s53, 0
      %s56 = sadd.s32 %s55, 1
      %s57 = scalar_select %p54, %s55, %s56
      %p60 = pneg %p54
      %p61 = scmp.eq.s32.totalorder %s19, 1
      %p62 = por %p60, %p61
      %p63 = scmp.ne.s32.totalorder %s55, %s58
      %p64 = scmp.eq.s32.totalorder %s19, 0
      %p65 = por %p63, %p64
      %p66 = scmp.ne.s32.totalorder %s55, %s58
      %p67 = scmp.eq.s32.totalorder %s24, 1
      %p68 = por %p66, %p67
      %p69 = scmp.ne.s32.totalorder %s58, %s59
      %p70 = scmp.eq.s32.totalorder %s24, 0
      %p71 = por %p69, %p70
      %p72 = scmp.ne.s32.totalorder %s58, %s59
      %p73 = scmp.eq.s32.totalorder %s25, 1
      %p74 = por %p72, %p73
      %p76 = scmp.ne.s32.totalorder %s59, %s75
      %p77 = scmp.eq.s32.totalorder %s25, 0
      %p78 = por %p76, %p77
      %s80 = sadd.s32 %s79, 1
      %p83 = scmp.eq.s32.totalorder %s19, 1
      %p84 = scmp.ne.s32.totalorder %s79, %s81
      %p85 = scmp.eq.s32.totalorder %s19, 0
      %p86 = por %p84, %p85
      %p87 = scmp.ne.s32.totalorder %s79, %s81
      %p88 = scmp.eq.s32.totalorder %s24, 1
      %p89 = por %p87, %p88
      %p90 = scmp.ne.s32.totalorder %s81, %s82
      %p91 = scmp.eq.s32.totalorder %s24, 0
      %p92 = por %p90, %p91
      %p93 = scmp.ne.s32.totalorder %s81, %s82
      %p94 = scmp.eq.s32.totalorder %s25, 1
      %p95 = por %p93, %p94
      %p97 = scmp.ne.s32.totalorder %s82, %s96
      %p98 = scmp.eq.s32.totalorder %s25, 0
      %p99 = por %p97, %p98
      %s101 = sadd.s32 %s100, 1
      %p104 = scmp.eq.s32.totalorder %s19, 1
      %p105 = scmp.ne.s32.totalorder %s100, %s102
      %p106 = scmp.eq.s32.totalorder %s19, 0
      %p107 = por %p105, %p106
      %p108 = scmp.ne.s32.totalorder %s100, %s102
      %p109 = scmp.eq.s32.totalorder %s24, 1
      %p110 = por %p108, %p109
      %p111 = scmp.ne.s32.totalorder %s102, %s103
      %p112 = scmp.eq.s32.totalorder %s24, 0
      %p113 = por %p111, %p112
      %p114 = scmp.ne.s32.totalorder %s102, %s103
      %p115 = scmp.eq.s32.totalorder %s25, 1
      %p116 = por %p114, %p115
      %p118 = scmp.ne.s32.totalorder %s103, %s117
      %p119 = scmp.eq.s32.totalorder %s25, 0
      %p120 = por %p118, %p119
      %s122 = sadd.s32 %s121, 1
      %p125 = scmp.eq.s32.totalorder %s19, 1
      %p126 = scmp.ne.s32.totalorder %s121, %s123
      %p127 = scmp.eq.s32.totalorder %s19, 0
      %p128 = por %p126, %p127
      %p129 = scmp.ne.s32.totalorder %s121, %s123
      %p130 = scmp.eq.s32.totalorder %s24, 1
      %p131 = por %p129, %p130
      %p132 = scmp.ne.s32.totalorder %s123, %s124
      %p133 = scmp.eq.s32.totalorder %s24, 0
      %p134 = por %p132, %p133
      %p135 = scmp.ne.s32.totalorder %s123, %s124
      %p136 = scmp.eq.s32.totalorder %s25, 1
      %p137 = por %p135, %p136
      %p139 = scmp.ne.s32.totalorder %s124, %s138
      %p140 = scmp.eq.s32.totalorder %s25, 0
      %p141 = por %p139, %p140
      %s143 = sadd.s32 %s142, 1
      %p146 = scmp.eq.s32.totalorder %s19, 1
      %p147 = scmp.ne.s32.totalorder %s142, %s144
      %p148 = scmp.eq.s32.totalorder %s19, 0
      %p149 = por %p147, %p148
      %p150 = scmp.ne.s32.totalorder %s142, %s144
      %p151 = scmp.eq.s32.totalorder %s24, 1
      %p152 = por %p150, %p151
      %p153 = scmp.ne.s32.totalorder %s144, %s145
      %p154 = scmp.eq.s32.totalorder %s24, 0
      %p155 = por %p153, %p154
      %p156 = scmp.ne.s32.totalorder %s144, %s145
      %p157 = scmp.eq.s32.totalorder %s25, 1
      %p158 = por %p156, %p157
      %p160 = scmp.ne.s32.totalorder %s145, %s159
      %p161 = scmp.eq.s32.totalorder %s25, 0
      %p162 = por %p160, %p161
      %s164 = sadd.s32 %s163, 1
      %p167 = scmp.eq.s32.totalorder %s19, 1
      %p168 = scmp.ne.s32.totalorder %s163, %s165
      %p169 = scmp.eq.s32.totalorder %s19, 0
      %p170 = por %p168, %p169
      %p171 = scmp.ne.s32.totalorder %s163, %s165
      %p172 = scmp.eq.s32.totalorder %s24, 1
      %p173 = por %p171, %p172
      %p174 = scmp.ne.s32.totalorder %s165, %s166
      %p175 = scmp.eq.s32.totalorder %s24, 0
      %p176 = por %p174, %p175
      %p177 = scmp.ne.s32.totalorder %s165, %s166
      %p178 = scmp.eq.s32.totalorder %s25, 1
      %p179 = por %p177, %p178
      %p181 = scmp.ne.s32.totalorder %s166, %s180
      %p182 = scmp.eq.s32.totalorder %s25, 0
      %p183 = por %p181, %p182
      %s185 = sadd.s32 %s184, 1
      %p188 = scmp.eq.s32.totalorder %s19, 1
      %p189 = scmp.ne.s32.totalorder %s184, %s186
      %p190 = scmp.eq.s32.totalorder %s19, 0
      %p191 = por %p189, %p190
      %p192 = scmp.ne.s32.totalorder %s184, %s186
      %p193 = scmp.eq.s32.totalorder %s24, 1
      %p194 = por %p192, %p193
      %p195 = scmp.ne.s32.totalorder %s186, %s187
      %p196 = scmp.eq.s32.totalorder %s24, 0
      %p197 = por %p195, %p196
      %p198 = scmp.ne.s32.totalorder %s186, %s187
      %p199 = scmp.eq.s32.totalorder %s25, 1
      %p200 = por %p198, %p199
      %p202 = scmp.ne.s32.totalorder %s187, %s201
      %p203 = scmp.eq.s32.totalorder %s25, 0
      %p204 = por %p202, %p203
      %s206 = sadd.s32 %s205, 1
      %p209 = scmp.eq.s32.totalorder %s19, 1
      %p210 = scmp.ne.s32.totalorder %s205, %s207
      %p211 = scmp.eq.s32.totalorder %s19, 0
      %p212 = por %p210, %p211
      %p213 = scmp.ne.s32.totalorder %s205, %s207
      %p214 = scmp.eq.s32.totalorder %s24, 1
      %p215 = por %p213, %p214
      %p216 = scmp.ne.s32.totalorder %s207, %s208
      %p217 = scmp.eq.s32.totalorder %s24, 0
      %p218 = por %p216, %p217
      %p219 = scmp.ne.s32.totalorder %s207, %s208
      %p220 = scmp.eq.s32.totalorder %s25, 1
      %p221 = por %p219, %p220
      %p223 = scmp.ne.s32.totalorder %s208, %s222
      %p224 = scmp.eq.s32.totalorder %s25, 0
      %p225 = por %p223, %p224
      %s227 = sadd.s32 %s226, 1
      %p230 = scmp.eq.s32.totalorder %s19, 1
      %p231 = scmp.ne.s32.totalorder %s226, %s228
      %p232 = scmp.eq.s32.totalorder %s19, 0
      %p233 = por %p231, %p232
      %p234 = scmp.ne.s32.totalorder %s226, %s228
      %p235 = scmp.eq.s32.totalorder %s24, 1
      %p236 = por %p234, %p235
      %p237 = scmp.ne.s32.totalorder %s228, %s229
      %p238 = scmp.eq.s32.totalorder %s24, 0
      %p239 = por %p237, %p238
      %p240 = scmp.ne.s32.totalorder %s228, %s229
      %p241 = scmp.eq.s32.totalorder %s25, 1
      %p242 = por %p240, %p241
      %p244 = scmp.ne.s32.totalorder %s229, %s243
      %p245 = scmp.eq.s32.totalorder %s25, 0
      %p246 = por %p244, %p245
      %s247 = ssub.s32 %s19, %s26
      %p248 = scmp.eq.s32.totalorder %s247, 0
      %s250 = sadd.s32 %s249, 1
      %s251 = scalar_select %p248, %s249, %s250
      %p254 = pneg %p248
      %p255 = scmp.eq.s32.totalorder %s19, 1
      %p256 = por %p254, %p255
      %p257 = scmp.ne.s32.totalorder %s249, %s252
      %p258 = scmp.eq.s32.totalorder %s19, 0
      %p259 = por %p257, %p258
      %p260 = scmp.ne.s32.totalorder %s249, %s252
      %p261 = scmp.eq.s32.totalorder %s24, 1
      %p262 = por %p260, %p261
      %p263 = scmp.ne.s32.totalorder %s252, %s253
      %p264 = scmp.eq.s32.totalorder %s24, 0
      %p265 = por %p263, %p264
      %p266 = scmp.ne.s32.totalorder %s252, %s253
      %p267 = scmp.eq.s32.totalorder %s25, 1
      %p268 = por %p266, %p267
      %p270 = scmp.ne.s32.totalorder %s253, %s269
      %p271 = scmp.eq.s32.totalorder %s25, 0
      %p272 = por %p270, %p271
      %p273 = scmp.le.s32.totalorder 1, %s19
      %p274 = scmp.lt.s32.totalorder %s19, 3
      %p275 = pnand %p273, %p274
      %p276 = pneg %p275
      // Predicated region
      $region9: #{multi_head_cross_attention.1} parent=5 // pred_check
        _
      $region10: #{multi_head_cross_attention.1} parent=5 // pred_check_branch
        %278 = sbr.rel (%p275) target = $region12
      $region11: #{multi_head_cross_attention.1} parent=5 // pred_region
        %s279 = ssub.s32 %s19, 1
        // Predicated region
        $region13: #{multi_head_cross_attention.1} parent=11 // pred_check
          %p280 = pneg %p92
        $region14: #{multi_head_cross_attention.1} parent=11 // pred_check_branch
          %282 = sbr.rel (%p280) target = $region16
        $region15: #{multi_head_cross_attention.1} parent=11 // pred_region
          _
        $region16: #{multi_head_cross_attention.1} parent=11 // pred_fallthru
          _
        // Predicated region
        $region17: #{multi_head_cross_attention.1} parent=11 // pred_check
          %p283 = pneg %p113
        $region18: #{multi_head_cross_attention.1} parent=11 // pred_check_branch
          %285 = sbr.rel (%p283) target = $region20
        $region19: #{multi_head_cross_attention.1} parent=11 // pred_region
          _
        $region20: #{multi_head_cross_attention.1} parent=11 // pred_fallthru
          _
        // Predicated region
        $region21: #{multi_head_cross_attention.1} parent=11 // pred_check
          %p286 = pneg %p134
        $region22: #{multi_head_cross_attention.1} parent=11 // pred_check_branch
          %288 = sbr.rel (%p286) target = $region24
        $region23: #{multi_head_cross_attention.1} parent=11 // pred_region
          _
        $region24: #{multi_head_cross_attention.1} parent=11 // pred_fallthru
          _
        // Predicated region
        $region25: #{multi_head_cross_attention.1} parent=11 // pred_check
          %p289 = pneg %p155
        $region26: #{multi_head_cross_attention.1} parent=11 // pred_check_branch
          %291 = sbr.rel (%p289) target = $region28
        $region27: #{multi_head_cross_attention.1} parent=11 // pred_region
          _
        $region28: #{multi_head_cross_attention.1} parent=11 // pred_fallthru
          _
        // Predicated region
        $region29: #{multi_head_cross_attention.1} parent=11 // pred_check
          %p292 = pneg %p176
        $region30: #{multi_head_cross_attention.1} parent=11 // pred_check_branch
          %294 = sbr.rel (%p292) target = $region32
        $region31: #{multi_head_cross_attention.1} parent=11 // pred_region
          _
        $region32: #{multi_head_cross_attention.1} parent=11 // pred_fallthru
          _
        // Predicated region
        $region33: #{multi_head_cross_attention.1} parent=11 // pred_check
          %p295 = pneg %p197
        $region34: #{multi_head_cross_attention.1} parent=11 // pred_check_branch
          %297 = sbr.rel (%p295) target = $region36
        $region35: #{multi_head_cross_attention.1} parent=11 // pred_region
          _
        $region36: #{multi_head_cross_attention.1} parent=11 // pred_fallthru
          _
        // Predicated region
        $region37: #{multi_head_cross_attention.1} parent=11 // pred_check
          %p298 = pneg %p218
        $region38: #{multi_head_cross_attention.1} parent=11 // pred_check_branch
          %300 = sbr.rel (%p298) target = $region40
        $region39: #{multi_head_cross_attention.1} parent=11 // pred_region
          _
        $region40: #{multi_head_cross_attention.1} parent=11 // pred_fallthru
          _
        // Predicated region
        $region41: #{multi_head_cross_attention.1} parent=11 // pred_check
          %p301 = pneg %p239
        $region42: #{multi_head_cross_attention.1} parent=11 // pred_check_branch
          %303 = sbr.rel (%p301) target = $region44
        $region43: #{multi_head_cross_attention.1} parent=11 // pred_region
          _
        $region44: #{multi_head_cross_attention.1} parent=11 // pred_fallthru
          _
      $region12: #{multi_head_cross_attention.1} parent=5 // pred_fallthru
        _
      %p304 = scmp.lt.s32.totalorder %s19, 2
      // Predicated region
      $region45: #{multi_head_cross_attention.1} parent=5 // pred_check
        %p305 = pneg %p304
      $region46: #{multi_head_cross_attention.1} parent=5 // pred_check_branch
        %307 = sbr.rel (%p305) target = $region48
      $region47: #{multi_head_cross_attention.1} parent=5 // pred_region
        // Predicated region
        $region49: #{multi_head_cross_attention.1} parent=47 // pred_check
          %p308 = pneg %p39
        $region50: #{multi_head_cross_attention.1} parent=47 // pred_check_branch
          %310 = sbr.rel (%p308) target = $region52
        $region51: #{multi_head_cross_attention.1} parent=47 // pred_region
          %p311 = scmp.lt.s32.totalorder %s19, 1
          %s312 = scalar_select %p311, %s19, 1
          %s313 = smul.addr %s312, 2
          %s314 = smul.addr %s313, 8
          %s315 = scalar_lea.vmem %s0, %s314
        $region52: #{multi_head_cross_attention.1} parent=47 // pred_fallthru
          _
        // Predicated region
        $region53: #{multi_head_cross_attention.1} parent=47 // pred_check
          %p316 = pneg %p65
        $region54: #{multi_head_cross_attention.1} parent=47 // pred_check_branch
          %318 = sbr.rel (%p316) target = $region56
        $region55: #{multi_head_cross_attention.1} parent=47 // pred_region
          %p319 = scmp.lt.s32.totalorder %s19, 1
          %s320 = scalar_select %p319, %s19, 1
          %s321 = smul.addr %s320, 8
          %s322 = scalar_lea.vmem %s1, %s321
        $region56: #{multi_head_cross_attention.1} parent=47 // pred_fallthru
          _
      $region48: #{multi_head_cross_attention.1} parent=5 // pred_fallthru
        _
      %p323 = scmp.le.s32.totalorder 1, %s19
      %p324 = scmp.lt.s32.totalorder %s19, 3
      %p325 = pnand %p323, %p324
      %p326 = pneg %p325
      // Predicated region
      $region57: #{multi_head_cross_attention.1} parent=5 // pred_check
        _
      $region58: #{multi_head_cross_attention.1} parent=5 // pred_check_branch
        %328 = sbr.rel (%p325) target = $region60
      $region59: #{multi_head_cross_attention.1} parent=5 // pred_region
        %s329 = ssub.s32 %s19, 1
        %p330 = scmp.lt.s32.totalorder %s24, 1
        %s331 = scalar_select %p330, %s24, 1
        %s332 = smul.addr %s331, 2
        %s333 = smul.addr %s332, 8
        %s334 = scalar_lea.vmem %s0, %s333
        %p335 = pneg %p45
        %p336 = pneg %p42
        %p337 = scmp.lt.s32.totalorder %s24, 1
        %s338 = scalar_select %p337, %s24, 1
        %s339 = smul.addr %s338, 8
        %s340 = scalar_lea.vmem %s1, %s339
        %p341 = pneg %p71
        %p342 = pneg %p68
        %p343 = pneg %p92
        %p344 = pneg %p89
        %p345 = pneg %p113
        %p346 = pneg %p110
        %p347 = pneg %p134
        %p348 = pneg %p131
        %p349 = pneg %p155
        %p350 = pneg %p152
        %p351 = pneg %p176
        %p352 = pneg %p173
        %p353 = pneg %p197
        %p354 = pneg %p194
        %p355 = pneg %p218
        %p356 = pneg %p215
        %p357 = pneg %p239
        %p358 = pneg %p236
        %p359 = pneg %p265
        %p360 = pneg %p262
        %s361 = sand.u32 %s252, 1
        %s362 = scalar_lea.sflag [#allocation8], %s361
        %s363 = sand.u32 %s252, 1
        %s364 = smul.addr %s363, 8
        %s365 = scalar_lea.vmem [#allocation7], %s364
        %p366 = scmp.lt.s32.totalorder %s24, 1
        %s367 = scalar_select %p366, %s24, 1
        %s368 = smul.addr %s367, 2
        %s369 = smul.addr %s368, 8
        %s370 = scalar_lea.vmem %s0, %s369
        %p371 = scmp.lt.s32.totalorder %s24, 1
        %s372 = scalar_select %p371, %s24, 1
        %s373 = smul.addr %s372, 8
        %s374 = scalar_lea.vmem %s1, %s373
        %v375 = vld [vmem:[%s370] sm:$0xff]
        %v376 = vld [vmem:[%s370 + $0x8] sm:$0xff]
        %v377 = vld [vmem:[%s374] sm:$0xff]
        %v378 = vld [vmem:[%s2] sm:$0xff]
        %v379 = vld [vmem:[%s2 + $0x8] sm:$0xff]
        %v380 = vld [vmem:[%s2 + $0x10] sm:$0xff]
        %v381 = vld [vmem:[%s2 + $0x18] sm:$0xff]
        %v382 = vld [vmem:[%s5] sm:$0x1]
        %v384 = vlaneseq
        %v385 = vshrl.u32 %v384, 7
        %v386 = vsub.s32 0, %v385
        %v387 = vrot.slane %v382, %v386
        %vm389 = vcmask 261120
        %v391 = vsel %vm389, %v375, 0
        %v394 = vsel %vm389, %v376, 0
        %396 = vmatprep.subr.mxu0 0.0
        %397 = vmatpush1.msra.mxu0 %v378
        %398 = vmatprep.subr.mxu0 0.0
        %399 = vmatpush1.msra.mxu0 %v379
        %400 = vmatprep.subr.mxu0 0.0
        %401 = vmatpush1.msra.mxu0 %v380
        %402 = vmatprep.subr.mxu0 0.0
        %403 = vmatpush1.msra.mxu0 %v381
        %404 = vmatprep.subr.mxu0 0.0
        %405 = vmatpush1.msra.mxu0 0.0
        %406 = vmatprep.subr.mxu0 0.0
        %407 = vmatpush1.msra.mxu0 0.0
        %408 = vmatprep.subr.mxu0 0.0
        %409 = vmatpush1.msra.mxu0 0.0
        %410 = vmatprep.subr.mxu0 0.0
        %411 = vmatpush1.msra.mxu0 0.0
        %412 = vmatprep.subr.mxu0 0.0
        %413 = vmatpush1.msra.mxu0 0.0
        %414 = vmatprep.subr.mxu0 0.0
        %415 = vmatpush1.msra.mxu0 0.0
        %416 = vmatprep.subr.mxu0 0.0
        %417 = vmatpush1.msra.mxu0 0.0
        %418 = vmatprep.subr.mxu0 0.0
        %419 = vmatpush1.msra.mxu0 0.0
        %420 = vmatprep.subr.mxu0 0.0
        %421 = vmatpush1.msra.mxu0 0.0
        %422 = vmatprep.subr.mxu0 0.0
        %423 = vmatpush1.msra.mxu0 0.0
        %424 = vmatprep.subr.mxu0 0.0
        %425 = vmatpush1.msra.mxu0 0.0
        %426 = vmatprep.subr.mxu0 0.0
        %427 = vmatpush1.msra.mxu0 0.0
        %428 = vmatprep.subr.mxu0 0.0
        %429 = vmatpush1.msra.mxu0 0.0
        %430 = vmatprep.subr.mxu0 0.0
        %431 = vmatpush1.msra.mxu0 0.0
        %432 = vmatprep.subr.mxu0 0.0
        %433 = vmatpush1.msra.mxu0 0.0
        %434 = vmatprep.subr.mxu0 0.0
        %435 = vmatpush1.msra.mxu0 0.0
        %436 = vmatprep.subr.mxu0 0.0
        %437 = vmatpush1.msra.mxu0 0.0
        %438 = vmatprep.subr.mxu0 0.0
        %439 = vmatpush1.msra.mxu0 0.0
        %440 = vmatprep.subr.mxu0 0.0
        %441 = vmatpush1.msra.mxu0 0.0
        %442 = vmatprep.subr.mxu0 0.0
        %443 = vmatpush1.msra.mxu0 0.0
        %444 = vmatprep.subr.mxu0 0.0
        %445 = vmatpush1.msra.mxu0 0.0
        %446 = vmatprep.subr.mxu0 0.0
        %447 = vmatpush1.msra.mxu0 0.0
        %448 = vmatprep.subr.mxu0 0.0
        %449 = vmatpush1.msra.mxu0 0.0
        %450 = vmatprep.subr.mxu0 0.0
        %451 = vmatpush1.msra.mxu0 0.0
        %452 = vmatprep.subr.mxu0 0.0
        %453 = vmatpush1.msra.mxu0 0.0
        %454 = vmatprep.subr.mxu0 0.0
        %455 = vmatpush1.msra.mxu0 0.0
        %456 = vmatprep.subr.mxu0 0.0
        %457 = vmatpush1.msra.mxu0 0.0
        %458 = vmatprep.subr.mxu0 0.0
        %459 = vmatpush1.msra.mxu0 0.0
        %460 = vmatprep.mubr.f32.mxu0 0.0
        %461 = vmatmul.mubr.f32.gmra.mrb[0].mxu0 %v391
        %v462 = vpop.f32.mrb[0].mxu0
        %v463 = vadd.f32 %v387, %v462
        %v464 = vpop.f32.mrb[0].mxu0
        %465 = vmatprep.mubr.f32.mxu0 0.0
        %466 = vmatmul.mubr.f32.gmra.mrb[0].mxu0 %v394
        %v467 = vpop.f32.mrb[0].mxu0
        %v468 = vadd.f32 %v387, %v467
        %v469 = vpop.f32.mrb[0].mxu0
        %470 = vdwg.mxu0
        %471 = vst.msk [vmem:[#allocation2] sm:$0xff] %vm389, %v463
        %472 = vst.msk [vmem:[#allocation2 + $0x8] sm:$0xff] %vm389, %v468
        %v473 = vld [vmem:[%s3] sm:$0xff]
        %v474 = vld [vmem:[%s3 + $0x8] sm:$0xff]
        %v475 = vld [vmem:[%s3 + $0x10] sm:$0xff]
        %v476 = vld [vmem:[%s3 + $0x18] sm:$0xff]
        %v477 = vld [vmem:[%s6] sm:$0x1]
        %v479 = vlaneseq
        %v480 = vshrl.u32 %v479, 7
        %v481 = vsub.s32 0, %v480
        %v482 = vrot.slane %v477, %v481
        %484 = vmatprep.subr.mxu0 0.0
        %485 = vmatpush1.msra.mxu0 %v473
        %486 = vmatprep.subr.mxu0 0.0
        %487 = vmatpush1.msra.mxu0 %v474
        %488 = vmatprep.subr.mxu0 0.0
        %489 = vmatpush1.msra.mxu0 %v475
        %490 = vmatprep.subr.mxu0 0.0
        %491 = vmatpush1.msra.mxu0 %v476
        %492 = vmatprep.subr.mxu0 0.0
        %493 = vmatpush1.msra.mxu0 0.0
        %494 = vmatprep.subr.mxu0 0.0
        %495 = vmatpush1.msra.mxu0 0.0
        %496 = vmatprep.subr.mxu0 0.0
        %497 = vmatpush1.msra.mxu0 0.0
        %498 = vmatprep.subr.mxu0 0.0
        %499 = vmatpush1.msra.mxu0 0.0
        %500 = vmatprep.subr.mxu0 0.0
        %501 = vmatpush1.msra.mxu0 0.0
        %502 = vmatprep.subr.mxu0 0.0
        %503 = vmatpush1.msra.mxu0 0.0
        %504 = vmatprep.subr.mxu0 0.0
        %505 = vmatpush1.msra.mxu0 0.0
        %506 = vmatprep.subr.mxu0 0.0
        %507 = vmatpush1.msra.mxu0 0.0
        %508 = vmatprep.subr.mxu0 0.0
        %509 = vmatpush1.msra.mxu0 0.0
        %510 = vmatprep.subr.mxu0 0.0
        %511 = vmatpush1.msra.mxu0 0.0
        %512 = vmatprep.subr.mxu0 0.0
        %513 = vmatpush1.msra.mxu0 0.0
        %514 = vmatprep.subr.mxu0 0.0
        %515 = vmatpush1.msra.mxu0 0.0
        %516 = vmatprep.subr.mxu0 0.0
        %517 = vmatpush1.msra.mxu0 0.0
        %518 = vmatprep.subr.mxu0 0.0
        %519 = vmatpush1.msra.mxu0 0.0
        %520 = vmatprep.subr.mxu0 0.0
        %521 = vmatpush1.msra.mxu0 0.0
        %522 = vmatprep.subr.mxu0 0.0
        %523 = vmatpush1.msra.mxu0 0.0
        %524 = vmatprep.subr.mxu0 0.0
        %525 = vmatpush1.msra.mxu0 0.0
        %526 = vmatprep.subr.mxu0 0.0
        %527 = vmatpush1.msra.mxu0 0.0
        %528 = vmatprep.subr.mxu0 0.0
        %529 = vmatpush1.msra.mxu0 0.0
        %530 = vmatprep.subr.mxu0 0.0
        %531 = vmatpush1.msra.mxu0 0.0
        %532 = vmatprep.subr.mxu0 0.0
        %533 = vmatpush1.msra.mxu0 0.0
        %534 = vmatprep.subr.mxu0 0.0
        %535 = vmatpush1.msra.mxu0 0.0
        %536 = vmatprep.subr.mxu0 0.0
        %537 = vmatpush1.msra.mxu0 0.0
        %538 = vmatprep.subr.mxu0 0.0
        %539 = vmatpush1.msra.mxu0 0.0
        %540 = vmatprep.subr.mxu0 0.0
        %541 = vmatpush1.msra.mxu0 0.0
        %542 = vmatprep.subr.mxu0 0.0
        %543 = vmatpush1.msra.mxu0 0.0
        %544 = vmatprep.subr.mxu0 0.0
        %545 = vmatpush1.msra.mxu0 0.0
        %546 = vmatprep.subr.mxu0 0.0
        %547 = vmatpush1.msra.mxu0 0.0
        %548 = vmatprep.mubr.f32.mxu0 0.0
        %549 = vmatmul.mubr.f32.gmra.mrb[0].mxu0 %v391
        %v550 = vpop.f32.mrb[0].mxu0
        %v551 = vadd.f32 %v482, %v550
        %v552 = vpop.f32.mrb[0].mxu0
        %553 = vmatprep.mubr.f32.mxu0 0.0
        %554 = vmatmul.mubr.f32.gmra.mrb[0].mxu0 %v394
        %v555 = vpop.f32.mrb[0].mxu0
        %v556 = vadd.f32 %v482, %v555
        %v557 = vpop.f32.mrb[0].mxu0
        %558 = vdwg.mxu0
        %559 = vst.msk [vmem:[#allocation3] sm:$0xff] %vm389, %v551
        %560 = vst.msk [vmem:[#allocation3 + $0x8] sm:$0xff] %vm389, %v556
        %v561 = vld [vmem:[%s4] sm:$0xff]
        %v562 = vld [vmem:[%s4 + $0x8] sm:$0xff]
        %v563 = vld [vmem:[%s4 + $0x10] sm:$0xff]
        %v564 = vld [vmem:[%s4 + $0x18] sm:$0xff]
        %v565 = vld [vmem:[%s7] sm:$0x1]
        %v567 = vlaneseq
        %v568 = vshrl.u32 %v567, 7
        %v569 = vsub.s32 0, %v568
        %v570 = vrot.slane %v565, %v569
        %v573 = vsel %vm389, %v377, 0
        %575 = vmatprep.subr.mxu0 0.0
        %576 = vmatpush1.msra.mxu0 %v561
        %577 = vmatprep.subr.mxu0 0.0
        %578 = vmatpush1.msra.mxu0 %v562
        %579 = vmatprep.subr.mxu0 0.0
        %580 = vmatpush1.msra.mxu0 %v563
        %581 = vmatprep.subr.mxu0 0.0
        %582 = vmatpush1.msra.mxu0 %v564
        %583 = vmatprep.subr.mxu0 0.0
        %584 = vmatpush1.msra.mxu0 0.0
        %585 = vmatprep.subr.mxu0 0.0
        %586 = vmatpush1.msra.mxu0 0.0
        %587 = vmatprep.subr.mxu0 0.0
        %588 = vmatpush1.msra.mxu0 0.0
        %589 = vmatprep.subr.mxu0 0.0
        %590 = vmatpush1.msra.mxu0 0.0
        %591 = vmatprep.subr.mxu0 0.0
        %592 = vmatpush1.msra.mxu0 0.0
        %593 = vmatprep.subr.mxu0 0.0
        %594 = vmatpush1.msra.mxu0 0.0
        %595 = vmatprep.subr.mxu0 0.0
        %596 = vmatpush1.msra.mxu0 0.0
        %597 = vmatprep.subr.mxu0 0.0
        %598 = vmatpush1.msra.mxu0 0.0
        %599 = vmatprep.subr.mxu0 0.0
        %600 = vmatpush1.msra.mxu0 0.0
        %601 = vmatprep.subr.mxu0 0.0
        %602 = vmatpush1.msra.mxu0 0.0
        %603 = vmatprep.subr.mxu0 0.0
        %604 = vmatpush1.msra.mxu0 0.0
        %605 = vmatprep.subr.mxu0 0.0
        %606 = vmatpush1.msra.mxu0 0.0
        %607 = vmatprep.subr.mxu0 0.0
        %608 = vmatpush1.msra.mxu0 0.0
        %609 = vmatprep.subr.mxu0 0.0
        %610 = vmatpush1.msra.mxu0 0.0
        %611 = vmatprep.subr.mxu0 0.0
        %612 = vmatpush1.msra.mxu0 0.0
        %613 = vmatprep.subr.mxu0 0.0
        %614 = vmatpush1.msra.mxu0 0.0
        %615 = vmatprep.subr.mxu0 0.0
        %616 = vmatpush1.msra.mxu0 0.0
        %617 = vmatprep.subr.mxu0 0.0
        %618 = vmatpush1.msra.mxu0 0.0
        %619 = vmatprep.subr.mxu0 0.0
        %620 = vmatpush1.msra.mxu0 0.0
        %621 = vmatprep.subr.mxu0 0.0
        %622 = vmatpush1.msra.mxu0 0.0
        %623 = vmatprep.subr.mxu0 0.0
        %624 = vmatpush1.msra.mxu0 0.0
        %625 = vmatprep.subr.mxu0 0.0
        %626 = vmatpush1.msra.mxu0 0.0
        %627 = vmatprep.subr.mxu0 0.0
        %628 = vmatpush1.msra.mxu0 0.0
        %629 = vmatprep.subr.mxu0 0.0
        %630 = vmatpush1.msra.mxu0 0.0
        %631 = vmatprep.subr.mxu0 0.0
        %632 = vmatpush1.msra.mxu0 0.0
        %633 = vmatprep.subr.mxu0 0.0
        %634 = vmatpush1.msra.mxu0 0.0
        %635 = vmatprep.subr.mxu0 0.0
        %636 = vmatpush1.msra.mxu0 0.0
        %637 = vmatprep.subr.mxu0 0.0
        %638 = vmatpush1.msra.mxu0 0.0
        %639 = vmatprep.mubr.f32.mxu0 0.0
        %640 = vmatmul.mubr.f32.gmra.mrb[0].mxu0 %v573
        %v641 = vpop.f32.mrb[0].mxu0
        %v642 = vadd.f32 %v570, %v641
        %v643 = vpop.f32.mrb[0].mxu0
        %644 = vdwg.mxu0
        %v645 = vmul.f32 %v642, 0.35355338
        %646 = vst.msk [vmem:[#allocation4] sm:$0xff] %vm389, %v645
        %v647 = vld [vmem:[#allocation4] sm:$0xff]
        %v648 = vld [vmem:[#allocation2] sm:$0xff]
        %v649 = vld [vmem:[#allocation2 + $0x8] sm:$0xff]
        %v650 = vld [vmem:[#allocation3] sm:$0xff]
        %v651 = vld [vmem:[#allocation3 + $0x8] sm:$0xff]
        %vm652 = vcmask 64512
        %v654 = vsel %vm652, %v647, 0
        %v657 = vsel %vm652, %v648, 0
        %v660 = vsel %vm652, %v649, 0
        %662 = vmatprep.subr.mxu0 0.0
        %663 = vmatpush1.xpose.msra.mxu0 %v657
        %664 = vmatprep.subr.mxu0 0.0
        %665 = vmatpush1.xpose.msra.mxu0 %v660
        %666 = vmatprep.subr.mxu0 0.0
        %667 = vmatpush1.xpose.msra.mxu0 0.0
        %668 = vmatprep.subr.mxu0 0.0
        %669 = vmatpush1.xpose.msra.mxu0 0.0
        %670 = vmatprep.subr.mxu0 0.0
        %671 = vmatpush1.xpose.msra.mxu0 0.0
        %672 = vmatprep.subr.mxu0 0.0
        %673 = vmatpush1.xpose.msra.mxu0 0.0
        %674 = vmatprep.subr.mxu0 0.0
        %675 = vmatpush1.xpose.msra.mxu0 0.0
        %676 = vmatprep.subr.mxu0 0.0
        %677 = vmatpush1.xpose.msra.mxu0 0.0
        %678 = vmatprep.subr.mxu0 0.0
        %679 = vmatpush1.xpose.msra.mxu0 0.0
        %680 = vmatprep.subr.mxu0 0.0
        %681 = vmatpush1.xpose.msra.mxu0 0.0
        %682 = vmatprep.subr.mxu0 0.0
        %683 = vmatpush1.xpose.msra.mxu0 0.0
        %684 = vmatprep.subr.mxu0 0.0
        %685 = vmatpush1.xpose.msra.mxu0 0.0
        %686 = vmatprep.subr.mxu0 0.0
        %687 = vmatpush1.xpose.msra.mxu0 0.0
        %688 = vmatprep.subr.mxu0 0.0
        %689 = vmatpush1.xpose.msra.mxu0 0.0
        %690 = vmatprep.subr.mxu0 0.0
        %691 = vmatpush1.xpose.msra.mxu0 0.0
        %692 = vmatprep.subr.mxu0 0.0
        %693 = vmatpush1.xpose.msra.mxu0 0.0
        %694 = vmatprep.subr.mxu0 0.0
        %695 = vmatpush1.xpose.msra.mxu0 0.0
        %696 = vmatprep.subr.mxu0 0.0
        %697 = vmatpush1.xpose.msra.mxu0 0.0
        %698 = vmatprep.subr.mxu0 0.0
        %699 = vmatpush1.xpose.msra.mxu0 0.0
        %700 = vmatprep.subr.mxu0 0.0
        %701 = vmatpush1.xpose.msra.mxu0 0.0
        %702 = vmatprep.subr.mxu0 0.0
        %703 = vmatpush1.xpose.msra.mxu0 0.0
        %704 = vmatprep.subr.mxu0 0.0
        %705 = vmatpush1.xpose.msra.mxu0 0.0
        %706 = vmatprep.subr.mxu0 0.0
        %707 = vmatpush1.xpose.msra.mxu0 0.0
        %708 = vmatprep.subr.mxu0 0.0
        %709 = vmatpush1.xpose.msra.mxu0 0.0
        %710 = vmatprep.subr.mxu0 0.0
        %711 = vmatpush1.xpose.msra.mxu0 0.0
        %712 = vmatprep.subr.mxu0 0.0
        %713 = vmatpush1.xpose.msra.mxu0 0.0
        %714 = vmatprep.subr.mxu0 0.0
        %715 = vmatpush1.xpose.msra.mxu0 0.0
        %716 = vmatprep.subr.mxu0 0.0
        %717 = vmatpush1.xpose.msra.mxu0 0.0
        %718 = vmatprep.subr.mxu0 0.0
        %719 = vmatpush1.xpose.msra.mxu0 0.0
        %720 = vmatprep.subr.mxu0 0.0
        %721 = vmatpush1.xpose.msra.mxu0 0.0
        %722 = vmatprep.subr.mxu0 0.0
        %723 = vmatpush1.xpose.msra.mxu0 0.0
        %724 = vmatprep.subr.mxu0 0.0
        %725 = vmatpush1.xpose.msra.mxu0 0.0
        %726 = vmatprep.mubr.f32.mxu0 0.0
        %727 = vmatmul.mubr.f32.gmra.mrb[0].mxu0 %v654
        %v728 = vpop.f32.mrb[0].mxu0
        %v729 = vadd.f32 0.0, %v728
        %v730 = vpop.f32.mrb[0].mxu0
        %731 = vdwg.mxu0
        %vm732 = vcmask 130048
        %v733 = vsel %vm732, %v729, -inf
        %734 = vmax.xlane.f32.xlu0 %v733
        %v735 = vpop.xlane.xlu0 %734
        %v736 = vsub.f32 %v729, %v735
        %v737 = vmul.f32 %v736, 1.442695
        %v738 = vpow.pop %v737
        %v739 = vsel %vm732, %v738, 0.0
        %740 = vadd.xlane.f32.xlu0 %v739
        %v741 = vpop.xlane.xlu0 %740
        %v743 = vsel %vm732, %v738, 0
        %745 = vmatprep.subr.mxu0 0.0
        %746 = vmatpush1.msra.mxu0 %v650
        %747 = vmatprep.subr.mxu0 0.0
        %748 = vmatpush1.msra.mxu0 %v651
        %749 = vmatprep.subr.mxu0 0.0
        %750 = vmatpush1.msra.mxu0 0.0
        %751 = vmatprep.subr.mxu0 0.0
        %752 = vmatpush1.msra.mxu0 0.0
        %753 = vmatprep.subr.mxu0 0.0
        %754 = vmatpush1.msra.mxu0 0.0
        %755 = vmatprep.subr.mxu0 0.0
        %756 = vmatpush1.msra.mxu0 0.0
        %757 = vmatprep.subr.mxu0 0.0
        %758 = vmatpush1.msra.mxu0 0.0
        %759 = vmatprep.subr.mxu0 0.0
        %760 = vmatpush1.msra.mxu0 0.0
        %761 = vmatprep.subr.mxu0 0.0
        %762 = vmatpush1.msra.mxu0 0.0
        %763 = vmatprep.subr.mxu0 0.0
        %764 = vmatpush1.msra.mxu0 0.0
        %765 = vmatprep.subr.mxu0 0.0
        %766 = vmatpush1.msra.mxu0 0.0
        %767 = vmatprep.subr.mxu0 0.0
        %768 = vmatpush1.msra.mxu0 0.0
        %769 = vmatprep.subr.mxu0 0.0
        %770 = vmatpush1.msra.mxu0 0.0
        %771 = vmatprep.subr.mxu0 0.0
        %772 = vmatpush1.msra.mxu0 0.0
        %773 = vmatprep.subr.mxu0 0.0
        %774 = vmatpush1.msra.mxu0 0.0
        %775 = vmatprep.subr.mxu0 0.0
        %776 = vmatpush1.msra.mxu0 0.0
        %777 = vmatprep.subr.mxu0 0.0
        %778 = vmatpush1.msra.mxu0 0.0
        %779 = vmatprep.subr.mxu0 0.0
        %780 = vmatpush1.msra.mxu0 0.0
        %781 = vmatprep.subr.mxu0 0.0
        %782 = vmatpush1.msra.mxu0 0.0
        %783 = vmatprep.subr.mxu0 0.0
        %784 = vmatpush1.msra.mxu0 0.0
        %785 = vmatprep.subr.mxu0 0.0
        %786 = vmatpush1.msra.mxu0 0.0
        %787 = vmatprep.subr.mxu0 0.0
        %788 = vmatpush1.msra.mxu0 0.0
        %789 = vmatprep.subr.mxu0 0.0
        %790 = vmatpush1.msra.mxu0 0.0
        %791 = vmatprep.subr.mxu0 0.0
        %792 = vmatpush1.msra.mxu0 0.0
        %793 = vmatprep.subr.mxu0 0.0
        %794 = vmatpush1.msra.mxu0 0.0
        %795 = vmatprep.subr.mxu0 0.0
        %796 = vmatpush1.msra.mxu0 0.0
        %797 = vmatprep.subr.mxu0 0.0
        %798 = vmatpush1.msra.mxu0 0.0
        %799 = vmatprep.subr.mxu0 0.0
        %800 = vmatpush1.msra.mxu0 0.0
        %801 = vmatprep.subr.mxu0 0.0
        %802 = vmatpush1.msra.mxu0 0.0
        %803 = vmatprep.subr.mxu0 0.0
        %804 = vmatpush1.msra.mxu0 0.0
        %805 = vmatprep.subr.mxu0 0.0
        %806 = vmatpush1.msra.mxu0 0.0
        %807 = vmatprep.subr.mxu0 0.0
        %808 = vmatpush1.msra.mxu0 0.0
        %809 = vmatprep.mubr.f32.mxu0 0.0
        %810 = vmatmul.mubr.f32.gmra.mrb[0].mxu0 %v743
        %v811 = vpop.f32.mrb[0].mxu0
        %v812 = vadd.f32 0.0, %v811
        %v813 = vpop.f32.mrb[0].mxu0
        %814 = vdwg.mxu0
        %v815 = vrcp.pop %v741
        %v816 = vmul.f32 %v812, %v815
        %817 = vst.msk [vmem:[#allocation5] sm:$0xff] %vm652, %v816
        %v818 = vld [vmem:[#allocation4] sm:$0xff]
        %v819 = vld [vmem:[#allocation2] sm:$0xff]
        %v820 = vld [vmem:[#allocation2 + $0x8] sm:$0xff]
        %v821 = vld [vmem:[#allocation3] sm:$0xff]
        %v822 = vld [vmem:[#allocation3 + $0x8] sm:$0xff]
        %824 = vrot.lane.b32.xlu0 %v818, 120
        %v825 = vpop.permute.xlu0 %824
        %828 = vrot.lane.b32.xlu0 %v819, 120
        %v829 = vpop.permute.xlu0 %828
        %830 = vrot.lane.b32.xlu0 %v820, 120
        %v831 = vpop.permute.xlu0 %830
        %v832 = vsel %vm652, %v825, 0
        %v834 = vsel %vm652, %v829, 0
        %v836 = vsel %vm652, %v831, 0
        %838 = vmatprep.subr.mxu0 0.0
        %839 = vmatpush1.xpose.msra.mxu0 %v834
        %840 = vmatprep.subr.mxu0 0.0
        %841 = vmatpush1.xpose.msra.mxu0 %v836
        %842 = vmatprep.subr.mxu0 0.0
        %843 = vmatpush1.xpose.msra.mxu0 0.0
        %844 = vmatprep.subr.mxu0 0.0
        %845 = vmatpush1.xpose.msra.mxu0 0.0
        %846 = vmatprep.subr.mxu0 0.0
        %847 = vmatpush1.xpose.msra.mxu0 0.0
        %848 = vmatprep.subr.mxu0 0.0
        %849 = vmatpush1.xpose.msra.mxu0 0.0
        %850 = vmatprep.subr.mxu0 0.0
        %851 = vmatpush1.xpose.msra.mxu0 0.0
        %852 = vmatprep.subr.mxu0 0.0
        %853 = vmatpush1.xpose.msra.mxu0 0.0
        %854 = vmatprep.subr.mxu0 0.0
        %855 = vmatpush1.xpose.msra.mxu0 0.0
        %856 = vmatprep.subr.mxu0 0.0
        %857 = vmatpush1.xpose.msra.mxu0 0.0
        %858 = vmatprep.subr.mxu0 0.0
        %859 = vmatpush1.xpose.msra.mxu0 0.0
        %860 = vmatprep.subr.mxu0 0.0
        %861 = vmatpush1.xpose.msra.mxu0 0.0
        %862 = vmatprep.subr.mxu0 0.0
        %863 = vmatpush1.xpose.msra.mxu0 0.0
        %864 = vmatprep.subr.mxu0 0.0
        %865 = vmatpush1.xpose.msra.mxu0 0.0
        %866 = vmatprep.subr.mxu0 0.0
        %867 = vmatpush1.xpose.msra.mxu0 0.0
        %868 = vmatprep.subr.mxu0 0.0
        %869 = vmatpush1.xpose.msra.mxu0 0.0
        %870 = vmatprep.subr.mxu0 0.0
        %871 = vmatpush1.xpose.msra.mxu0 0.0
        %872 = vmatprep.subr.mxu0 0.0
        %873 = vmatpush1.xpose.msra.mxu0 0.0
        %874 = vmatprep.subr.mxu0 0.0
        %875 = vmatpush1.xpose.msra.mxu0 0.0
        %876 = vmatprep.subr.mxu0 0.0
        %877 = vmatpush1.xpose.msra.mxu0 0.0
        %878 = vmatprep.subr.mxu0 0.0
        %879 = vmatpush1.xpose.msra.mxu0 0.0
        %880 = vmatprep.subr.mxu0 0.0
        %881 = vmatpush1.xpose.msra.mxu0 0.0
        %882 = vmatprep.subr.mxu0 0.0
        %883 = vmatpush1.xpose.msra.mxu0 0.0
        %884 = vmatprep.subr.mxu0 0.0
        %885 = vmatpush1.xpose.msra.mxu0 0.0
        %886 = vmatprep.subr.mxu0 0.0
        %887 = vmatpush1.xpose.msra.mxu0 0.0
        %888 = vmatprep.subr.mxu0 0.0
        %889 = vmatpush1.xpose.msra.mxu0 0.0
        %890 = vmatprep.subr.mxu0 0.0
        %891 = vmatpush1.xpose.msra.mxu0 0.0
        %892 = vmatprep.subr.mxu0 0.0
        %893 = vmatpush1.xpose.msra.mxu0 0.0
        %894 = vmatprep.subr.mxu0 0.0
        %895 = vmatpush1.xpose.msra.mxu0 0.0
        %896 = vmatprep.subr.mxu0 0.0
        %897 = vmatpush1.xpose.msra.mxu0 0.0
        %898 = vmatprep.subr.mxu0 0.0
        %899 = vmatpush1.xpose.msra.mxu0 0.0
        %900 = vmatprep.subr.mxu0 0.0
        %901 = vmatpush1.xpose.msra.mxu0 0.0
        %902 = vmatprep.mubr.f32.mxu0 0.0
        %903 = vmatmul.mubr.f32.gmra.mrb[0].mxu0 %v832
        %v904 = vpop.f32.mrb[0].mxu0
        %v905 = vadd.f32 0.0, %v904
        %v906 = vpop.f32.mrb[0].mxu0
        %907 = vdwg.mxu0
        %v908 = vsel %vm732, %v905, -inf
        %909 = vmax.xlane.f32.xlu0 %v908
        %v910 = vpop.xlane.xlu0 %909
        %v911 = vsub.f32 %v905, %v910
        %v912 = vmul.f32 %v911, 1.442695
        %v913 = vpow.pop %v912
        %v914 = vsel %vm732, %v913, 0.0
        %915 = vadd.xlane.f32.xlu0 %v914
        %v916 = vpop.xlane.xlu0 %915
        %919 = vrot.lane.b32.xlu0 %v821, 120
        %v920 = vpop.permute.xlu0 %919
        %921 = vrot.lane.b32.xlu0 %v822, 120
        %v922 = vpop.permute.xlu0 %921
        %v926 = vsel %vm732, %v913, 0
        %928 = vmatprep.subr.mxu0 0.0
        %929 = vmatpush1.msra.mxu0 %v920
        %930 = vmatprep.subr.mxu0 0.0
        %931 = vmatpush1.msra.mxu0 %v922
        %932 = vmatprep.subr.mxu0 0.0
        %933 = vmatpush1.msra.mxu0 0.0
        %934 = vmatprep.subr.mxu0 0.0
        %935 = vmatpush1.msra.mxu0 0.0
        %936 = vmatprep.subr.mxu0 0.0
        %937 = vmatpush1.msra.mxu0 0.0
        %938 = vmatprep.subr.mxu0 0.0
        %939 = vmatpush1.msra.mxu0 0.0
        %940 = vmatprep.subr.mxu0 0.0
        %941 = vmatpush1.msra.mxu0 0.0
        %942 = vmatprep.subr.mxu0 0.0
        %943 = vmatpush1.msra.mxu0 0.0
        %944 = vmatprep.subr.mxu0 0.0
        %945 = vmatpush1.msra.mxu0 0.0
        %946 = vmatprep.subr.mxu0 0.0
        %947 = vmatpush1.msra.mxu0 0.0
        %948 = vmatprep.subr.mxu0 0.0
        %949 = vmatpush1.msra.mxu0 0.0
        %950 = vmatprep.subr.mxu0 0.0
        %951 = vmatpush1.msra.mxu0 0.0
        %952 = vmatprep.subr.mxu0 0.0
        %953 = vmatpush1.msra.mxu0 0.0
        %954 = vmatprep.subr.mxu0 0.0
        %955 = vmatpush1.msra.mxu0 0.0
        %956 = vmatprep.subr.mxu0 0.0
        %957 = vmatpush1.msra.mxu0 0.0
        %958 = vmatprep.subr.mxu0 0.0
        %959 = vmatpush1.msra.mxu0 0.0
        %960 = vmatprep.subr.mxu0 0.0
        %961 = vmatpush1.msra.mxu0 0.0
        %962 = vmatprep.subr.mxu0 0.0
        %963 = vmatpush1.msra.mxu0 0.0
        %964 = vmatprep.subr.mxu0 0.0
        %965 = vmatpush1.msra.mxu0 0.0
        %966 = vmatprep.subr.mxu0 0.0
        %967 = vmatpush1.msra.mxu0 0.0
        %968 = vmatprep.subr.mxu0 0.0
        %969 = vmatpush1.msra.mxu0 0.0
        %970 = vmatprep.subr.mxu0 0.0
        %971 = vmatpush1.msra.mxu0 0.0
        %972 = vmatprep.subr.mxu0 0.0
        %973 = vmatpush1.msra.mxu0 0.0
        %974 = vmatprep.subr.mxu0 0.0
        %975 = vmatpush1.msra.mxu0 0.0
        %976 = vmatprep.subr.mxu0 0.0
        %977 = vmatpush1.msra.mxu0 0.0
        %978 = vmatprep.subr.mxu0 0.0
        %979 = vmatpush1.msra.mxu0 0.0
        %980 = vmatprep.subr.mxu0 0.0
        %981 = vmatpush1.msra.mxu0 0.0
        %982 = vmatprep.subr.mxu0 0.0
        %983 = vmatpush1.msra.mxu0 0.0
        %984 = vmatprep.subr.mxu0 0.0
        %985 = vmatpush1.msra.mxu0 0.0
        %986 = vmatprep.subr.mxu0 0.0
        %987 = vmatpush1.msra.mxu0 0.0
        %988 = vmatprep.subr.mxu0 0.0
        %989 = vmatpush1.msra.mxu0 0.0
        %990 = vmatprep.subr.mxu0 0.0
        %991 = vmatpush1.msra.mxu0 0.0
        %992 = vmatprep.mubr.f32.mxu0 0.0
        %993 = vmatmul.mubr.f32.gmra.mrb[0].mxu0 %v926
        %v994 = vpop.f32.mrb[0].mxu0
        %v995 = vadd.f32 0.0, %v994
        %v996 = vpop.f32.mrb[0].mxu0
        %997 = vdwg.mxu0
        %v998 = vrcp.pop %v916
        %v999 = vmul.f32 %v995, %v998
        %1000 = vst.msk [vmem:[#allocation5 + $0x8] sm:$0xff] %vm652, %v999
        %v1001 = vld [vmem:[#allocation4] sm:$0xff]
        %v1002 = vld [vmem:[#allocation2] sm:$0xff]
        %v1003 = vld [vmem:[#allocation2 + $0x8] sm:$0xff]
        %v1004 = vld [vmem:[#allocation3] sm:$0xff]
        %v1005 = vld [vmem:[#allocation3 + $0x8] sm:$0xff]
        %1007 = vrot.lane.b32.xlu0 %v1001, 112
        %v1008 = vpop.permute.xlu0 %1007
        %1011 = vrot.lane.b32.xlu0 %v1002, 112
        %v1012 = vpop.permute.xlu0 %1011
        %1013 = vrot.lane.b32.xlu0 %v1003, 112
        %v1014 = vpop.permute.xlu0 %1013
        %v1015 = vsel %vm652, %v1008, 0
        %v1017 = vsel %vm652, %v1012, 0
        %v1019 = vsel %vm652, %v1014, 0
        %1021 = vmatprep.subr.mxu0 0.0
        %1022 = vmatpush1.xpose.msra.mxu0 %v1017
        %1023 = vmatprep.subr.mxu0 0.0
        %1024 = vmatpush1.xpose.msra.mxu0 %v1019
        %1025 = vmatprep.subr.mxu0 0.0
        %1026 = vmatpush1.xpose.msra.mxu0 0.0
        %1027 = vmatprep.subr.mxu0 0.0
        %1028 = vmatpush1.xpose.msra.mxu0 0.0
        %1029 = vmatprep.subr.mxu0 0.0
        %1030 = vmatpush1.xpose.msra.mxu0 0.0
        %1031 = vmatprep.subr.mxu0 0.0
        %1032 = vmatpush1.xpose.msra.mxu0 0.0
        %1033 = vmatprep.subr.mxu0 0.0
        %1034 = vmatpush1.xpose.msra.mxu0 0.0
        %1035 = vmatprep.subr.mxu0 0.0
        %1036 = vmatpush1.xpose.msra.mxu0 0.0
        %1037 = vmatprep.subr.mxu0 0.0
        %1038 = vmatpush1.xpose.msra.mxu0 0.0
        %1039 = vmatprep.subr.mxu0 0.0
        %1040 = vmatpush1.xpose.msra.mxu0 0.0
        %1041 = vmatprep.subr.mxu0 0.0
        %1042 = vmatpush1.xpose.msra.mxu0 0.0
        %1043 = vmatprep.subr.mxu0 0.0
        %1044 = vmatpush1.xpose.msra.mxu0 0.0
        %1045 = vmatprep.subr.mxu0 0.0
        %1046 = vmatpush1.xpose.msra.mxu0 0.0
        %1047 = vmatprep.subr.mxu0 0.0
        %1048 = vmatpush1.xpose.msra.mxu0 0.0
        %1049 = vmatprep.subr.mxu0 0.0
        %1050 = vmatpush1.xpose.msra.mxu0 0.0
        %1051 = vmatprep.subr.mxu0 0.0
        %1052 = vmatpush1.xpose.msra.mxu0 0.0
        %1053 = vmatprep.subr.mxu0 0.0
        %1054 = vmatpush1.xpose.msra.mxu0 0.0
        %1055 = vmatprep.subr.mxu0 0.0
        %1056 = vmatpush1.xpose.msra.mxu0 0.0
        %1057 = vmatprep.subr.mxu0 0.0
        %1058 = vmatpush1.xpose.msra.mxu0 0.0
        %1059 = vmatprep.subr.mxu0 0.0
        %1060 = vmatpush1.xpose.msra.mxu0 0.0
        %1061 = vmatprep.subr.mxu0 0.0
        %1062 = vmatpush1.xpose.msra.mxu0 0.0
        %1063 = vmatprep.subr.mxu0 0.0
        %1064 = vmatpush1.xpose.msra.mxu0 0.0
        %1065 = vmatprep.subr.mxu0 0.0
        %1066 = vmatpush1.xpose.msra.mxu0 0.0
        %1067 = vmatprep.subr.mxu0 0.0
        %1068 = vmatpush1.xpose.msra.mxu0 0.0
        %1069 = vmatprep.subr.mxu0 0.0
        %1070 = vmatpush1.xpose.msra.mxu0 0.0
        %1071 = vmatprep.subr.mxu0 0.0
        %1072 = vmatpush1.xpose.msra.mxu0 0.0
        %1073 = vmatprep.subr.mxu0 0.0
        %1074 = vmatpush1.xpose.msra.mxu0 0.0
        %1075 = vmatprep.subr.mxu0 0.0
        %1076 = vmatpush1.xpose.msra.mxu0 0.0
        %1077 = vmatprep.subr.mxu0 0.0
        %1078 = vmatpush1.xpose.msra.mxu0 0.0
        %1079 = vmatprep.subr.mxu0 0.0
        %1080 = vmatpush1.xpose.msra.mxu0 0.0
        %1081 = vmatprep.subr.mxu0 0.0
        %1082 = vmatpush1.xpose.msra.mxu0 0.0
        %1083 = vmatprep.subr.mxu0 0.0
        %1084 = vmatpush1.xpose.msra.mxu0 0.0
        %1085 = vmatprep.mubr.f32.mxu0 0.0
        %1086 = vmatmul.mubr.f32.gmra.mrb[0].mxu0 %v1015
        %v1087 = vpop.f32.mrb[0].mxu0
        %v1088 = vadd.f32 0.0, %v1087
        %v1089 = vpop.f32.mrb[0].mxu0
        %1090 = vdwg.mxu0
        %v1091 = vsel %vm732, %v1088, -inf
        %1092 = vmax.xlane.f32.xlu0 %v1091
        %v1093 = vpop.xlane.xlu0 %1092
        %v1094 = vsub.f32 %v1088, %v1093
        %v1095 = vmul.f32 %v1094, 1.442695
        %v1096 = vpow.pop %v1095
        %v1097 = vsel %vm732, %v1096, 0.0
        %1098 = vadd.xlane.f32.xlu0 %v1097
        %v1099 = vpop.xlane.xlu0 %1098
        %1102 = vrot.lane.b32.xlu0 %v1004, 112
        %v1103 = vpop.permute.xlu0 %1102
        %1104 = vrot.lane.b32.xlu0 %v1005, 112
        %v1105 = vpop.permute.xlu0 %1104
        %v1109 = vsel %vm732, %v1096, 0
        %1111 = vmatprep.subr.mxu0 0.0
        %1112 = vmatpush1.msra.mxu0 %v1103
        %1113 = vmatprep.subr.mxu0 0.0
        %1114 = vmatpush1.msra.mxu0 %v1105
        %1115 = vmatprep.subr.mxu0 0.0
        %1116 = vmatpush1.msra.mxu0 0.0
        %1117 = vmatprep.subr.mxu0 0.0
        %1118 = vmatpush1.msra.mxu0 0.0
        %1119 = vmatprep.subr.mxu0 0.0
        %1120 = vmatpush1.msra.mxu0 0.0
        %1121 = vmatprep.subr.mxu0 0.0
        %1122 = vmatpush1.msra.mxu0 0.0
        %1123 = vmatprep.subr.mxu0 0.0
        %1124 = vmatpush1.msra.mxu0 0.0
        %1125 = vmatprep.subr.mxu0 0.0
        %1126 = vmatpush1.msra.mxu0 0.0
        %1127 = vmatprep.subr.mxu0 0.0
        %1128 = vmatpush1.msra.mxu0 0.0
        %1129 = vmatprep.subr.mxu0 0.0
        %1130 = vmatpush1.msra.mxu0 0.0
        %1131 = vmatprep.subr.mxu0 0.0
        %1132 = vmatpush1.msra.mxu0 0.0
        %1133 = vmatprep.subr.mxu0 0.0
        %1134 = vmatpush1.msra.mxu0 0.0
        %1135 = vmatprep.subr.mxu0 0.0
        %1136 = vmatpush1.msra.mxu0 0.0
        %1137 = vmatprep.subr.mxu0 0.0
        %1138 = vmatpush1.msra.mxu0 0.0
        %1139 = vmatprep.subr.mxu0 0.0
        %1140 = vmatpush1.msra.mxu0 0.0
        %1141 = vmatprep.subr.mxu0 0.0
        %1142 = vmatpush1.msra.mxu0 0.0
        %1143 = vmatprep.subr.mxu0 0.0
        %1144 = vmatpush1.msra.mxu0 0.0
        %1145 = vmatprep.subr.mxu0 0.0
        %1146 = vmatpush1.msra.mxu0 0.0
        %1147 = vmatprep.subr.mxu0 0.0
        %1148 = vmatpush1.msra.mxu0 0.0
        %1149 = vmatprep.subr.mxu0 0.0
        %1150 = vmatpush1.msra.mxu0 0.0
        %1151 = vmatprep.subr.mxu0 0.0
        %1152 = vmatpush1.msra.mxu0 0.0
        %1153 = vmatprep.subr.mxu0 0.0
        %1154 = vmatpush1.msra.mxu0 0.0
        %1155 = vmatprep.subr.mxu0 0.0
        %1156 = vmatpush1.msra.mxu0 0.0
        %1157 = vmatprep.subr.mxu0 0.0
        %1158 = vmatpush1.msra.mxu0 0.0
        %1159 = vmatprep.subr.mxu0 0.0
        %1160 = vmatpush1.msra.mxu0 0.0
        %1161 = vmatprep.subr.mxu0 0.0
        %1162 = vmatpush1.msra.mxu0 0.0
        %1163 = vmatprep.subr.mxu0 0.0
        %1164 = vmatpush1.msra.mxu0 0.0
        %1165 = vmatprep.subr.mxu0 0.0
        %1166 = vmatpush1.msra.mxu0 0.0
        %1167 = vmatprep.subr.mxu0 0.0
        %1168 = vmatpush1.msra.mxu0 0.0
        %1169 = vmatprep.subr.mxu0 0.0
        %1170 = vmatpush1.msra.mxu0 0.0
        %1171 = vmatprep.subr.mxu0 0.0
        %1172 = vmatpush1.msra.mxu0 0.0
        %1173 = vmatprep.subr.mxu0 0.0
        %1174 = vmatpush1.msra.mxu0 0.0
        %1175 = vmatprep.mubr.f32.mxu0 0.0
        %1176 = vmatmul.mubr.f32.gmra.mrb[0].mxu0 %v1109
        %v1177 = vpop.f32.mrb[0].mxu0
        %v1178 = vadd.f32 0.0, %v1177
        %v1179 = vpop.f32.mrb[0].mxu0
        %1180 = vdwg.mxu0
        %v1181 = vrcp.pop %v1099
        %v1182 = vmul.f32 %v1178, %v1181
        %1183 = vst.msk [vmem:[#allocation5 + $0x10] sm:$0xff] %vm652, %v1182
        %v1184 = vld [vmem:[#allocation4] sm:$0xff]
        %v1185 = vld [vmem:[#allocation2] sm:$0xff]
        %v1186 = vld [vmem:[#allocation2 + $0x8] sm:$0xff]
        %v1187 = vld [vmem:[#allocation3] sm:$0xff]
        %v1188 = vld [vmem:[#allocation3 + $0x8] sm:$0xff]
        %1190 = vrot.lane.b32.xlu0 %v1184, 104
        %v1191 = vpop.permute.xlu0 %1190
        %1194 = vrot.lane.b32.xlu0 %v1185, 104
        %v1195 = vpop.permute.xlu0 %1194
        %1196 = vrot.lane.b32.xlu0 %v1186, 104
        %v1197 = vpop.permute.xlu0 %1196
        %v1198 = vsel %vm652, %v1191, 0
        %v1200 = vsel %vm652, %v1195, 0
        %v1202 = vsel %vm652, %v1197, 0
        %1204 = vmatprep.subr.mxu0 0.0
        %1205 = vmatpush1.xpose.msra.mxu0 %v1200
        %1206 = vmatprep.subr.mxu0 0.0
        %1207 = vmatpush1.xpose.msra.mxu0 %v1202
        %1208 = vmatprep.subr.mxu0 0.0
        %1209 = vmatpush1.xpose.msra.mxu0 0.0
        %1210 = vmatprep.subr.mxu0 0.0
        %1211 = vmatpush1.xpose.msra.mxu0 0.0
        %1212 = vmatprep.subr.mxu0 0.0
        %1213 = vmatpush1.xpose.msra.mxu0 0.0
        %1214 = vmatprep.subr.mxu0 0.0
        %1215 = vmatpush1.xpose.msra.mxu0 0.0
        %1216 = vmatprep.subr.mxu0 0.0
        %1217 = vmatpush1.xpose.msra.mxu0 0.0
        %1218 = vmatprep.subr.mxu0 0.0
        %1219 = vmatpush1.xpose.msra.mxu0 0.0
        %1220 = vmatprep.subr.mxu0 0.0
        %1221 = vmatpush1.xpose.msra.mxu0 0.0
        %1222 = vmatprep.subr.mxu0 0.0
        %1223 = vmatpush1.xpose.msra.mxu0 0.0
        %1224 = vmatprep.subr.mxu0 0.0
        %1225 = vmatpush1.xpose.msra.mxu0 0.0
        %1226 = vmatprep.subr.mxu0 0.0
        %1227 = vmatpush1.xpose.msra.mxu0 0.0
        %1228 = vmatprep.subr.mxu0 0.0
        %1229 = vmatpush1.xpose.msra.mxu0 0.0
        %1230 = vmatprep.subr.mxu0 0.0
        %1231 = vmatpush1.xpose.msra.mxu0 0.0
        %1232 = vmatprep.subr.mxu0 0.0
        %1233 = vmatpush1.xpose.msra.mxu0 0.0
        %1234 = vmatprep.subr.mxu0 0.0
        %1235 = vmatpush1.xpose.msra.mxu0 0.0
        %1236 = vmatprep.subr.mxu0 0.0
        %1237 = vmatpush1.xpose.msra.mxu0 0.0
        %1238 = vmatprep.subr.mxu0 0.0
        %1239 = vmatpush1.xpose.msra.mxu0 0.0
        %1240 = vmatprep.subr.mxu0 0.0
        %1241 = vmatpush1.xpose.msra.mxu0 0.0
        %1242 = vmatprep.subr.mxu0 0.0
        %1243 = vmatpush1.xpose.msra.mxu0 0.0
        %1244 = vmatprep.subr.mxu0 0.0
        %1245 = vmatpush1.xpose.msra.mxu0 0.0
        %1246 = vmatprep.subr.mxu0 0.0
        %1247 = vmatpush1.xpose.msra.mxu0 0.0
        %1248 = vmatprep.subr.mxu0 0.0
        %1249 = vmatpush1.xpose.msra.mxu0 0.0
        %1250 = vmatprep.subr.mxu0 0.0
        %1251 = vmatpush1.xpose.msra.mxu0 0.0
        %1252 = vmatprep.subr.mxu0 0.0
        %1253 = vmatpush1.xpose.msra.mxu0 0.0
        %1254 = vmatprep.subr.mxu0 0.0
        %1255 = vmatpush1.xpose.msra.mxu0 0.0
        %1256 = vmatprep.subr.mxu0 0.0
        %1257 = vmatpush1.xpose.msra.mxu0 0.0
        %1258 = vmatprep.subr.mxu0 0.0
        %1259 = vmatpush1.xpose.msra.mxu0 0.0
        %1260 = vmatprep.subr.mxu0 0.0
        %1261 = vmatpush1.xpose.msra.mxu0 0.0
        %1262 = vmatprep.subr.mxu0 0.0
        %1263 = vmatpush1.xpose.msra.mxu0 0.0
        %1264 = vmatprep.subr.mxu0 0.0
        %1265 = vmatpush1.xpose.msra.mxu0 0.0
        %1266 = vmatprep.subr.mxu0 0.0
        %1267 = vmatpush1.xpose.msra.mxu0 0.0
        %1268 = vmatprep.mubr.f32.mxu0 0.0
        %1269 = vmatmul.mubr.f32.gmra.mrb[0].mxu0 %v1198
        %v1270 = vpop.f32.mrb[0].mxu0
        %v1271 = vadd.f32 0.0, %v1270
        %v1272 = vpop.f32.mrb[0].mxu0
        %1273 = vdwg.mxu0
        %v1274 = vsel %vm732, %v1271, -inf
        %1275 = vmax.xlane.f32.xlu0 %v1274
        %v1276 = vpop.xlane.xlu0 %1275
        %v1277 = vsub.f32 %v1271, %v1276
        %v1278 = vmul.f32 %v1277, 1.442695
        %v1279 = vpow.pop %v1278
        %v1280 = vsel %vm732, %v1279, 0.0
        %1281 = vadd.xlane.f32.xlu0 %v1280
        %v1282 = vpop.xlane.xlu0 %1281
        %1285 = vrot.lane.b32.xlu0 %v1187, 104
        %v1286 = vpop.permute.xlu0 %1285
        %1287 = vrot.lane.b32.xlu0 %v1188, 104
        %v1288 = vpop.permute.xlu0 %1287
        %v1292 = vsel %vm732, %v1279, 0
        %1294 = vmatprep.subr.mxu0 0.0
        %1295 = vmatpush1.msra.mxu0 %v1286
        %1296 = vmatprep.subr.mxu0 0.0
        %1297 = vmatpush1.msra.mxu0 %v1288
        %1298 = vmatprep.subr.mxu0 0.0
        %1299 = vmatpush1.msra.mxu0 0.0
        %1300 = vmatprep.subr.mxu0 0.0
        %1301 = vmatpush1.msra.mxu0 0.0
        %1302 = vmatprep.subr.mxu0 0.0
        %1303 = vmatpush1.msra.mxu0 0.0
        %1304 = vmatprep.subr.mxu0 0.0
        %1305 = vmatpush1.msra.mxu0 0.0
        %1306 = vmatprep.subr.mxu0 0.0
        %1307 = vmatpush1.msra.mxu0 0.0
        %1308 = vmatprep.subr.mxu0 0.0
        %1309 = vmatpush1.msra.mxu0 0.0
        %1310 = vmatprep.subr.mxu0 0.0
        %1311 = vmatpush1.msra.mxu0 0.0
        %1312 = vmatprep.subr.mxu0 0.0
        %1313 = vmatpush1.msra.mxu0 0.0
        %1314 = vmatprep.subr.mxu0 0.0
        %1315 = vmatpush1.msra.mxu0 0.0
        %1316 = vmatprep.subr.mxu0 0.0
        %1317 = vmatpush1.msra.mxu0 0.0
        %1318 = vmatprep.subr.mxu0 0.0
        %1319 = vmatpush1.msra.mxu0 0.0
        %1320 = vmatprep.subr.mxu0 0.0
        %1321 = vmatpush1.msra.mxu0 0.0
        %1322 = vmatprep.subr.mxu0 0.0
        %1323 = vmatpush1.msra.mxu0 0.0
        %1324 = vmatprep.subr.mxu0 0.0
        %1325 = vmatpush1.msra.mxu0 0.0
        %1326 = vmatprep.subr.mxu0 0.0
        %1327 = vmatpush1.msra.mxu0 0.0
        %1328 = vmatprep.subr.mxu0 0.0
        %1329 = vmatpush1.msra.mxu0 0.0
        %1330 = vmatprep.subr.mxu0 0.0
        %1331 = vmatpush1.msra.mxu0 0.0
        %1332 = vmatprep.subr.mxu0 0.0
        %1333 = vmatpush1.msra.mxu0 0.0
        %1334 = vmatprep.subr.mxu0 0.0
        %1335 = vmatpush1.msra.mxu0 0.0
        %1336 = vmatprep.subr.mxu0 0.0
        %1337 = vmatpush1.msra.mxu0 0.0
        %1338 = vmatprep.subr.mxu0 0.0
        %1339 = vmatpush1.msra.mxu0 0.0
        %1340 = vmatprep.subr.mxu0 0.0
        %1341 = vmatpush1.msra.mxu0 0.0
        %1342 = vmatprep.subr.mxu0 0.0
        %1343 = vmatpush1.msra.mxu0 0.0
        %1344 = vmatprep.subr.mxu0 0.0
        %1345 = vmatpush1.msra.mxu0 0.0
        %1346 = vmatprep.subr.mxu0 0.0
        %1347 = vmatpush1.msra.mxu0 0.0
        %1348 = vmatprep.subr.mxu0 0.0
        %1349 = vmatpush1.msra.mxu0 0.0
        %1350 = vmatprep.subr.mxu0 0.0
        %1351 = vmatpush1.msra.mxu0 0.0
        %1352 = vmatprep.subr.mxu0 0.0
        %1353 = vmatpush1.msra.mxu0 0.0
        %1354 = vmatprep.subr.mxu0 0.0
        %1355 = vmatpush1.msra.mxu0 0.0
        %1356 = vmatprep.subr.mxu0 0.0
        %1357 = vmatpush1.msra.mxu0 0.0
        %1358 = vmatprep.mubr.f32.mxu0 0.0
        %1359 = vmatmul.mubr.f32.gmra.mrb[0].mxu0 %v1292
        %v1360 = vpop.f32.mrb[0].mxu0
        %v1361 = vadd.f32 0.0, %v1360
        %v1362 = vpop.f32.mrb[0].mxu0
        %1363 = vdwg.mxu0
        %v1364 = vrcp.pop %v1282
        %v1365 = vmul.f32 %v1361, %v1364
        %1366 = vst.msk [vmem:[#allocation5 + $0x18] sm:$0xff] %vm652, %v1365
        %v1367 = vld [vmem:[#allocation5] ss:$4 sm:$0xff]
        %1368 = vst.msk [vmem:[#allocation6] sm:$0xff] %vm652, %v1367
        %s1369 = scalar_lea.vmem [#allocation5], 1
        %v1370 = vld [vmem:[%s1369] ss:$4 sm:$0xff]
        %1372 = vrot.lane.b32.xlu0 %v1370, 8
        %v1373 = vpop.permute.xlu0 %1372
        %vm1375 = vcmask 130112
        %1376 = vst.msk [vmem:[#allocation6] sm:$0xff] %vm1375, %v1373
        %s1377 = scalar_lea.vmem [#allocation5], 2
        %v1378 = vld [vmem:[%s1377] ss:$4 sm:$0xff]
        %1380 = vrot.lane.b32.xlu0 %v1378, 16
        %v1381 = vpop.permute.xlu0 %1380
        %vm1383 = vcmask 195712
        %1384 = vst.msk [vmem:[#allocation6] sm:$0xff] %vm1383, %v1381
        %s1385 = scalar_lea.vmem [#allocation5], 3
        %v1386 = vld [vmem:[%s1385] ss:$4 sm:$0xff]
        %1388 = vrot.lane.b32.xlu0 %v1386, 24
        %v1389 = vpop.permute.xlu0 %1388
        %vm1391 = vcmask 261312
        %1392 = vst.msk [vmem:[#allocation6] sm:$0xff] %vm1391, %v1389
        %v1393 = vld [vmem:[#allocation6] sm:$0xff]
        %v1394 = vld [vmem:[%s8] sm:$0xff]
        %v1395 = vld [vmem:[%s8 + $0x8] sm:$0xff]
        %v1396 = vld [vmem:[%s8 + $0x10] sm:$0xff]
        %v1397 = vld [vmem:[%s8 + $0x18] sm:$0xff]
        %v1398 = vld [vmem:[%s9] sm:$0x1]
        %v1400 = vlaneseq
        %v1401 = vshrl.u32 %v1400, 7
        %v1402 = vsub.s32 0, %v1401
        %v1403 = vrot.slane %v1398, %v1402
        %v1406 = vsel %vm389, %v1393, 0
        %1408 = vmatprep.subr.mxu0 0.0
        %1409 = vmatpush1.msra.mxu0 %v1394
        %1410 = vmatprep.subr.mxu0 0.0
        %1411 = vmatpush1.msra.mxu0 %v1395
        %1412 = vmatprep.subr.mxu0 0.0
        %1413 = vmatpush1.msra.mxu0 %v1396
        %1414 = vmatprep.subr.mxu0 0.0
        %1415 = vmatpush1.msra.mxu0 %v1397
        %1416 = vmatprep.subr.mxu0 0.0
        %1417 = vmatpush1.msra.mxu0 0.0
        %1418 = vmatprep.subr.mxu0 0.0
        %1419 = vmatpush1.msra.mxu0 0.0
        %1420 = vmatprep.subr.mxu0 0.0
        %1421 = vmatpush1.msra.mxu0 0.0
        %1422 = vmatprep.subr.mxu0 0.0
        %1423 = vmatpush1.msra.mxu0 0.0
        %1424 = vmatprep.subr.mxu0 0.0
        %1425 = vmatpush1.msra.mxu0 0.0
        %1426 = vmatprep.subr.mxu0 0.0
        %1427 = vmatpush1.msra.mxu0 0.0
        %1428 = vmatprep.subr.mxu0 0.0
        %1429 = vmatpush1.msra.mxu0 0.0
        %1430 = vmatprep.subr.mxu0 0.0
        %1431 = vmatpush1.msra.mxu0 0.0
        %1432 = vmatprep.subr.mxu0 0.0
        %1433 = vmatpush1.msra.mxu0 0.0
        %1434 = vmatprep.subr.mxu0 0.0
        %1435 = vmatpush1.msra.mxu0 0.0
        %1436 = vmatprep.subr.mxu0 0.0
        %1437 = vmatpush1.msra.mxu0 0.0
        %1438 = vmatprep.subr.mxu0 0.0
        %1439 = vmatpush1.msra.mxu0 0.0
        %1440 = vmatprep.subr.mxu0 0.0
        %1441 = vmatpush1.msra.mxu0 0.0
        %1442 = vmatprep.subr.mxu0 0.0
        %1443 = vmatpush1.msra.mxu0 0.0
        %1444 = vmatprep.subr.mxu0 0.0
        %1445 = vmatpush1.msra.mxu0 0.0
        %1446 = vmatprep.subr.mxu0 0.0
        %1447 = vmatpush1.msra.mxu0 0.0
        %1448 = vmatprep.subr.mxu0 0.0
        %1449 = vmatpush1.msra.mxu0 0.0
        %1450 = vmatprep.subr.mxu0 0.0
        %1451 = vmatpush1.msra.mxu0 0.0
        %1452 = vmatprep.subr.mxu0 0.0
        %1453 = vmatpush1.msra.mxu0 0.0
        %1454 = vmatprep.subr.mxu0 0.0
        %1455 = vmatpush1.msra.mxu0 0.0
        %1456 = vmatprep.subr.mxu0 0.0
        %1457 = vmatpush1.msra.mxu0 0.0
        %1458 = vmatprep.subr.mxu0 0.0
        %1459 = vmatpush1.msra.mxu0 0.0
        %1460 = vmatprep.subr.mxu0 0.0
        %1461 = vmatpush1.msra.mxu0 0.0
        %1462 = vmatprep.subr.mxu0 0.0
        %1463 = vmatpush1.msra.mxu0 0.0
        %1464 = vmatprep.subr.mxu0 0.0
        %1465 = vmatpush1.msra.mxu0 0.0
        %1466 = vmatprep.subr.mxu0 0.0
        %1467 = vmatpush1.msra.mxu0 0.0
        %1468 = vmatprep.subr.mxu0 0.0
        %1469 = vmatpush1.msra.mxu0 0.0
        %1470 = vmatprep.subr.mxu0 0.0
        %1471 = vmatpush1.msra.mxu0 0.0
        %1472 = vmatprep.mubr.f32.mxu0 0.0
        %1473 = vmatmul.mubr.f32.gmra.mrb[0].mxu0 %v1406
        %v1474 = vpop.f32.mrb[0].mxu0
        %v1475 = vadd.f32 %v1403, %v1474
        %v1476 = vpop.f32.mrb[0].mxu0
        %1477 = vdwg.mxu0
        %1478 = vst.msk [vmem:[%s365] sm:$0xff] %vm389, %v1475
        %s1479 = sand.u32 %s252, 1
        %s1480 = scalar_lea.sflag [#allocation8], %s1479
        %s1481 = sand.u32 %s252, 1
        %s1482 = smul.addr %s1481, 8
        %s1483 = scalar_lea.vmem [#allocation7], %s1482
        // Predicated region
        $region61: #{multi_head_cross_attention.1} parent=59 // pred_check
          %p1484 = pneg %p262
        $region62: #{multi_head_cross_attention.1} parent=59 // pred_check_branch
          %1486 = sbr.rel (%p1484) target = $region64
        $region63: #{multi_head_cross_attention.1} parent=59 // pred_region
          %s1488 = ssub.s32 128, 128
          %1489 = vsyncadd %s1480, %s1488
          %s1490 = smul.addr %s24, 128
          %s1491 = scalar_lea.hbm %s10, %s1490
          %s1493 = sshll.u32 %s1483, 4
          %s1494 = int_to_ptr.vmem [resolvable:$true] %s1493
          %1496 = dma.vmem_to_hbm [thread:$0]  %s1494, 128, %s1491, %s1480
        $region64: #{multi_head_cross_attention.1} parent=59 // pred_fallthru
          _
      $region60: #{multi_head_cross_attention.1} parent=5 // pred_fallthru
        _
      %p1497 = scmp.le.s32.totalorder 2, %s19
      // Predicated region
      $region65: #{multi_head_cross_attention.1} parent=5 // pred_check
        %p1498 = pneg %p1497
      $region66: #{multi_head_cross_attention.1} parent=5 // pred_check_branch
        %1500 = sbr.rel (%p1498) target = $region68
      $region67: #{multi_head_cross_attention.1} parent=5 // pred_region
        %s1501 = ssub.s32 %s19, 2
        // Predicated region
        $region69: #{multi_head_cross_attention.1} parent=67 // pred_check
          %p1502 = pneg %p268
        $region70: #{multi_head_cross_attention.1} parent=67 // pred_check_branch
          %1504 = sbr.rel (%p1502) target = $region72
        $region71: #{multi_head_cross_attention.1} parent=67 // pred_region
          %s1505 = sand.u32 %s253, 1
          %s1506 = scalar_lea.sflag [#allocation8], %s1505
          %s1507 = sand.u32 %s253, 1
          %s1508 = smul.addr %s1507, 8
          %s1509 = scalar_lea.vmem [#allocation7], %s1508
          %1510 = dma.done %s1506, 128
        $region72: #{multi_head_cross_attention.1} parent=67 // pred_fallthru
          _
      $region68: #{multi_head_cross_attention.1} parent=5 // pred_fallthru
        _
    $region6: #{multi_head_cross_attention.1} parent=1 // loop_footer
      %s23 = sadd.s32 1, %s19
    $region7: #{multi_head_cross_attention.1} parent=1 // loop_footer_branch
      %18 = sbr.rel target = $region3
    $region8: #{multi_head_cross_attention.1} parent=1 // loop_exit
      _
    %1511 = vsyncpa [#allocation8], 1
    %s1512 = scalar_lea.sflag [#allocation8], 1
    %1513 = vsyncpa %s1512, 1

</llo_original>
